<compile_context>
chip_gen: v7x
topology: tpu7x:2x2x1
jax: 0.10.0
libtpu: 0.0.40
codegen_flags: <defaults>
</compile_context>

<pallas_src>
import jax
import jax.numpy as jnp
import numpy as np
from jax.experimental import pallas as pl
from jax.experimental.pallas import tpu as pltpu

LANES = 128                    # rays per row (lane width)
CH = 3                         # rgb channels (interleaved in memory)
ROW_W = LANES * CH             # 384 lanes per (rows, 384) block row
MAX_BLOCK_ROWS = 256           # 256 rows * 128 rays = 32768 rays per grid step


def _round_up(x, m):
    return ((x + m - 1) // m) * m


# Constant channel-interleave expansion matrix: E[i, j] = 1.0 iff j // 3 == i,
# so (gain @ E)[m, j] == gain[m, j // 3]  (per-ray gain copied to its 3 channels).
_EXPAND = (np.arange(ROW_W)[None, :] // CH == np.arange(LANES)[:, None]).astype(np.float32)


def _vignetting_kernel(k_ref, e_ref, x_ref, y_ref, rgb_ref, out_ref):
    # k_ref: (3,) f32 in SMEM -> scalar polynomial coefficients
    k1 = k_ref[0]
    k2 = k_ref[1]
    k3 = k_ref[2]

    x = x_ref[...]                                  # (R, 128)
    y = y_ref[...]                                  # (R, 128)
    r = x * x + y * y                               # squared radius per ray

    # Horner form of 1 + k1*r + k2*r^2 + k3*r^3
    gain = 1.0 + r * (k1 + r * (k2 + r * k3))       # (R, 128)

    # Expand per-ray gain to the channel-interleaved (R, 384) layout on the MXU
    # (0/1 matrix, HIGHEST precision -> exact copy of the f32 gain values).
    gain3 = jnp.dot(gain, e_ref[...],
                    preferred_element_type=jnp.float32,
                    precision=jax.lax.Precision.HIGHEST)

    scaled = rgb_ref[...] * gain3                   # (R, 384)

    # project_to_correct_range(..., mode='zick_zack'): period-2 triangle-wave
    # reflection into [0, 1]:  1 - |mod(v, 2) - 1|  ==  1 - |2*frac(v/2) - 1|.
    # TODO(synk): exact project_to_correct_range source not provided; standard
    # zick-zack (reflect) mapping onto [0, 1] is implemented here.
    t = scaled * 0.5
    frac = t - jnp.floor(t)
    out_ref[...] = 1.0 - jnp.abs(2.0 * frac - 1.0)


@jax.jit
def _vignetting_impl(rgb, norm_x, norm_y, k):
    n = rgb.shape[0]
    n_pad = _round_up(max(n, LANES), LANES)
    if n_pad != n:                                   # only pad when 128 doesn't divide N
        pad = n_pad - n
        rgb = jnp.pad(rgb, ((0, pad), (0, 0)))
        norm_x = jnp.pad(norm_x, (0, pad))
        norm_y = jnp.pad(norm_y, (0, pad))
    rows = n_pad // LANES

    # Free, contiguous reshapes (no transpose): channels stay interleaved.
    rgb2d = rgb.reshape(rows, ROW_W)
    x2d = norm_x.reshape(rows, LANES)
    y2d = norm_y.reshape(rows, LANES)

    # >= 4 grid steps when possible (v7x 2-TC sharding), sublane-aligned rows,
    # capped at MAX_BLOCK_ROWS; ragged last block handled by the cdiv grid.
    if rows <= 8:
        block_rows = rows
    else:
        block_rows = min(MAX_BLOCK_ROWS, _round_up(pl.cdiv(rows, 4), 8))
    grid = (pl.cdiv(rows, block_rows),)

    expand = jnp.asarray(_EXPAND)

    out2d = pl.pallas_call(
        _vignetting_kernel,
        out_shape=jax.ShapeDtypeStruct((rows, ROW_W), jnp.float32),
        grid=grid,
        in_specs=[
            pl.BlockSpec(memory_space=pltpu.SMEM),                 # k1,k2,k3 scalars
            pl.BlockSpec((LANES, ROW_W), lambda i: (0, 0)),        # expand const (fetched once)
            pl.BlockSpec((block_rows, LANES), lambda i: (i, 0)),   # norm_x
            pl.BlockSpec((block_rows, LANES), lambda i: (i, 0)),   # norm_y
            pl.BlockSpec((block_rows, ROW_W), lambda i: (i, 0)),   # rgb (interleaved)
        ],
        out_specs=pl.BlockSpec((block_rows, ROW_W), lambda i: (i, 0)),
        compiler_params=pltpu.CompilerParams(
            dimension_semantics=("parallel",)),
    )(k, expand, x2d, y2d, rgb2d)

    out = out2d.reshape(n_pad, CH)
    if n_pad != n:
        out = out[:n]
    return out


def vignetting_correction(rgb, norm_x, norm_y, vignetting_parameters,
                          do_vignetting_correction=True):
    """rgb: (N, 3); norm_x / norm_y: (N,); vignetting_parameters: (3,). Returns (N, 3) f32."""
    if not do_vignetting_correction:
        # Mirrors the module's early return when correction is disabled / coords missing.
        return rgb
    return _vignetting_impl(
        rgb.astype(jnp.float32),
        norm_x.astype(jnp.float32),
        norm_y.astype(jnp.float32),
        vignetting_parameters.astype(jnp.float32),
    )


def _reference(rgb, norm_x, norm_y, k):
    r = norm_x ** 2 + norm_y ** 2
    offset = k[0] * r + k[1] * r ** 2 + k[2] * r ** 3
    out = rgb * (1.0 + offset[:, None])
    return 1.0 - jnp.abs(jnp.mod(out, 2.0) - 1.0)


if __name__ == "__main__":
    key = jax.random.PRNGKey(0)
    k_rgb, k_x, k_y, k_param = jax.random.split(key, 4)

    # N=1000 exercises the pad/slice tail path; N=1536 exercises the fully free
    # reshape path (multiple of 128) plus a ragged last grid block (12 rows, R=8).
    for N in (1000, 1536):
        rgb = jax.random.uniform(k_rgb, (N, 3), dtype=jnp.float32)
        norm_x = jax.random.uniform(k_x, (N,), dtype=jnp.float32, minval=-1.0, maxval=1.0)
        norm_y = jax.random.uniform(k_y, (N,), dtype=jnp.float32, minval=-1.0, maxval=1.0)
        # Module __init__ uses zeros((3,)); use small nonzero values so the
        # polynomial path is actually exercised.
        vignetting_parameters = 0.1 * jax.random.normal(k_param, (3,), dtype=jnp.float32)

        out = vignetting_correction(rgb, norm_x, norm_y, vignetting_parameters)
        out = jax.block_until_ready(out)

        ref = _reference(rgb, norm_x, norm_y, vignetting_parameters)
        np.testing.assert_allclose(np.asarray(out), np.asarray(ref), rtol=1e-5, atol=1e-5)

    print("KERNEL_OK")
</pallas_src>

<mosaic_0001>
module attributes {stable_mosaic.version = 11 : i64} {
  func.func @_vignetting_kernel(%arg0: i32, %arg1: memref<3xf32, #tpu.memory_space<smem>>, %arg2: memref<128x384xf32, #tpu.memory_space<vmem>>, %arg3: memref<8x128xf32, #tpu.memory_space<vmem>>, %arg4: memref<8x128xf32, #tpu.memory_space<vmem>>, %arg5: memref<8x384xf32, #tpu.memory_space<vmem>>, %arg6: memref<8x384xf32, #tpu.memory_space<vmem>>) attributes {dimension_semantics = [#tpu.dimension_semantics<parallel>], iteration_bounds = array<i64: 1>, scalar_prefetch = 0 : i64, scratch_operands = 0 : i64, tpu.core_type = #tpu.core_type<tc>, window_params = [{transform_indices = @transform_0, window_bounds = array<i64: 3>}, {pipeline_mode = #tpu.pipeline_mode<synchronous>, transform_indices = @transform_1, window_bounds = array<i64: 128, 384>}, {transform_indices = @transform_2, window_bounds = array<i64: 8, 128>}, {transform_indices = @transform_3, window_bounds = array<i64: 8, 128>}, {transform_indices = @transform_4, window_bounds = array<i64: 8, 384>}, {transform_indices = @transform_5, window_bounds = array<i64: 8, 384>}]} {
    %c0 = arith.constant 0 : index
    %0 = memref.load %arg1[%c0] : memref<3xf32, #tpu.memory_space<smem>>
    %c1 = arith.constant 1 : index
    %1 = memref.load %arg1[%c1] : memref<3xf32, #tpu.memory_space<smem>>
    %c2 = arith.constant 2 : index
    %2 = memref.load %arg1[%c2] : memref<3xf32, #tpu.memory_space<smem>>
    %c0_0 = arith.constant 0 : index
    %c0_1 = arith.constant 0 : index
    %3 = vector.load %arg3[%c0_0, %c0_1] : memref<8x128xf32, #tpu.memory_space<vmem>>, vector<8x128xf32>
    %c0_2 = arith.constant 0 : index
    %c0_3 = arith.constant 0 : index
    %4 = vector.load %arg4[%c0_2, %c0_3] : memref<8x128xf32, #tpu.memory_space<vmem>>, vector<8x128xf32>
    %5 = arith.mulf %3, %3 : vector<8x128xf32>
    %6 = arith.mulf %4, %4 : vector<8x128xf32>
    %7 = arith.addf %5, %6 : vector<8x128xf32>
    %8 = vector.broadcast %2 : f32 to vector<8x128xf32>
    %9 = arith.mulf %7, %8 : vector<8x128xf32>
    %10 = vector.broadcast %1 : f32 to vector<8x128xf32>
    %11 = arith.addf %10, %9 : vector<8x128xf32>
    %12 = arith.mulf %7, %11 : vector<8x128xf32>
    %13 = vector.broadcast %0 : f32 to vector<8x128xf32>
    %14 = arith.addf %13, %12 : vector<8x128xf32>
    %15 = arith.mulf %7, %14 : vector<8x128xf32>
    %cst = arith.constant 1.000000e+00 : f32
    %16 = vector.broadcast %cst : f32 to vector<8x128xf32>
    %17 = arith.addf %16, %15 : vector<8x128xf32>
    %c0_4 = arith.constant 0 : index
    %c0_5 = arith.constant 0 : index
    %18 = vector.load %arg2[%c0_4, %c0_5] : memref<128x384xf32, #tpu.memory_space<vmem>>, vector<128x384xf32>
    %cst_6 = arith.constant dense<0.000000e+00> : vector<8x384xf32>
    %19 = tpu.matmul %17, %18, %cst_6 {dimension_numbers = #tpu.dot_dimension_numbers<[1], [0], [0], [1], [0, 0, 1, 1], [], []>, precision = #tpu.contract_precision<fp32>} : vector<8x128xf32>, vector<128x384xf32>, vector<8x384xf32> -> vector<8x384xf32>
    %c0_7 = arith.constant 0 : index
    %c0_8 = arith.constant 0 : index
    %20 = vector.load %arg5[%c0_7, %c0_8] : memref<8x384xf32, #tpu.memory_space<vmem>>, vector<8x384xf32>
    %21 = arith.mulf %20, %19 : vector<8x384xf32>
    %cst_9 = arith.constant 5.000000e-01 : f32
    %22 = vector.broadcast %cst_9 : f32 to vector<8x384xf32>
    %23 = arith.mulf %21, %22 : vector<8x384xf32>
    %24 = math.floor %23 : vector<8x384xf32>
    %25 = arith.subf %23, %24 : vector<8x384xf32>
    %cst_10 = arith.constant 2.000000e+00 : f32
    %26 = vector.broadcast %cst_10 : f32 to vector<8x384xf32>
    %27 = arith.mulf %26, %25 : vector<8x384xf32>
    %cst_11 = arith.constant 1.000000e+00 : f32
    %28 = vector.broadcast %cst_11 : f32 to vector<8x384xf32>
    %29 = arith.subf %27, %28 : vector<8x384xf32>
    %30 = math.absf %29 : vector<8x384xf32>
    %cst_12 = arith.constant 1.000000e+00 : f32
    %31 = vector.broadcast %cst_12 : f32 to vector<8x384xf32>
    %32 = arith.subf %31, %30 : vector<8x384xf32>
    %c0_13 = arith.constant 0 : index
    %c0_14 = arith.constant 0 : index
    %33 = vector.load %arg6[%c0_13, %c0_14] : memref<8x384xf32, #tpu.memory_space<vmem>>, vector<8x384xf32>
    tpu.vector_store %arg6[%c0_13, %c0_14], %32 {strides = array<i32>} : memref<8x384xf32, #tpu.memory_space<vmem>>, vector<8x384xf32>,
    return
  }
  func.func @transform_0(%arg0: i32) -> i32 {
    %c0_i32 = arith.constant 0 : i32
    %c0_i32_0 = arith.constant 0 : i32
    return %c0_i32 : i32
  }
  func.func @transform_1(%arg0: i32) -> (i32, i32) {
    %c0_i32 = arith.constant 0 : i32
    %c0_i32_0 = arith.constant 0 : i32
    %c0_i32_1 = arith.constant 0 : i32
    return %c0_i32, %c0_i32_0 : i32, i32
  }
  func.func @transform_2(%arg0: i32) -> (i32, i32) {
    %c0_i32 = arith.constant 0 : i32
    %c0_i32_0 = arith.constant 0 : i32
    return %arg0, %c0_i32 : i32, i32
  }
  func.func @transform_3(%arg0: i32) -> (i32, i32) {
    %c0_i32 = arith.constant 0 : i32
    %c0_i32_0 = arith.constant 0 : i32
    return %arg0, %c0_i32 : i32, i32
  }
  func.func @transform_4(%arg0: i32) -> (i32, i32) {
    %c0_i32 = arith.constant 0 : i32
    %c0_i32_0 = arith.constant 0 : i32
    return %arg0, %c0_i32 : i32, i32
  }
  func.func @transform_5(%arg0: i32) -> (i32, i32) {
    %c0_i32 = arith.constant 0 : i32
    %c0_i32_0 = arith.constant 0 : i32
    return %arg0, %c0_i32 : i32, i32
  }
}

</mosaic_0001>

<llo_original>
// kernel: _vignetting_impl.1
$region0: #{_vignetting_impl.1}
  #allocation0 [shape = 'u32[]', space=smem, size = 0x4, offset = 0x4, fixed_abs, tag = 'smem constant byte address 0x4 - core index']
  #allocation1 [shape = 'u32[144,128]{1,0:T(1,128)}', space=vmem, size = 0x12000, scoped, tag = 'internal scratch']
  %s0 = inlined_call_operand.vmem [shape: f32[3], index: 0, kind: input, shape index: {}]
  %s1 = inlined_call_operand.vmem [shape: f32[128,384], index: 1, kind: input, shape index: {}]
  %s2 = inlined_call_operand.vmem [shape: f32[8,128], index: 2, kind: input, shape index: {}]
  %s3 = inlined_call_operand.vmem [shape: f32[8,128], index: 3, kind: input, shape index: {}]
  %s4 = inlined_call_operand.vmem [shape: f32[8,384], index: 4, kind: input, shape index: {}]
  %s5 = inlined_call_operand.vmem [shape: f32[8,384], index: 5, kind: output, shape index: {}]
  %s6 = sld [smem:[#allocation0]]
  $region34: #{_vignetting_impl.1} parent=0
    _
  %s8 = ssub.s32 1, %s6
  %s9 = scalar_select 0, %s8, %s6
  $region1: #{_vignetting_impl.1} parent=0
    #allocation2 [shape = 'u8[512]{0}', space=smem, size = 0x200, scoped, tag = 'input window, operand 0, single buffered']
    #allocation3 [shape = 's32[1]{0}', space=sflag, size = 0x4, scoped, tag = 'scoped memory for _vignetting_impl.1']
    %10 = vsyncpa [#allocation3], 0
    // Predicated region
    $region2: #{_vignetting_impl.1} parent=1 // pred_check
      _
    $region3: #{_vignetting_impl.1} parent=1 // pred_check_branch
      %12 = sbr.rel (0) target = $region5
    $region4: #{_vignetting_impl.1} parent=1 // pred_region
      %s14 = ssub.s32 16, 16
      %15 = vsyncadd [#allocation3], %s14
      %s17 = sshll.u32 %s0, 4
      %s18 = int_to_ptr.vmem [resolvable:$true] %s17
      %20 = dma.vmem_to_smem %s18, 16, [#allocation2], [#allocation3]
    $region5: #{_vignetting_impl.1} parent=1 // pred_fallthru
      _
    // Predicated region
    $region6: #{_vignetting_impl.1} parent=1 // pred_check
      _
    $region7: #{_vignetting_impl.1} parent=1 // pred_check_branch
      %22 = sbr.rel (0) target = $region9
    $region8: #{_vignetting_impl.1} parent=1 // pred_region
      _
    $region9: #{_vignetting_impl.1} parent=1 // pred_fallthru
      _
    // Predicated region
    $region10: #{_vignetting_impl.1} parent=1 // pred_check
      _
    $region11: #{_vignetting_impl.1} parent=1 // pred_check_branch
      %24 = sbr.rel (0) target = $region13
    $region12: #{_vignetting_impl.1} parent=1 // pred_region
      _
    $region13: #{_vignetting_impl.1} parent=1 // pred_fallthru
      _
    // Predicated region
    $region14: #{_vignetting_impl.1} parent=1 // pred_check
      _
    $region15: #{_vignetting_impl.1} parent=1 // pred_check_branch
      %26 = sbr.rel (0) target = $region17
    $region16: #{_vignetting_impl.1} parent=1 // pred_region
      _
    $region17: #{_vignetting_impl.1} parent=1 // pred_fallthru
      _
    // Predicated region
    $region18: #{_vignetting_impl.1} parent=1 // pred_check
      _
    $region19: #{_vignetting_impl.1} parent=1 // pred_check_branch
      %28 = sbr.rel (0) target = $region21
    $region20: #{_vignetting_impl.1} parent=1 // pred_region
      _
    $region21: #{_vignetting_impl.1} parent=1 // pred_fallthru
      _
    // Predicated region
    $region22: #{_vignetting_impl.1} parent=1 // pred_check
      _
    $region23: #{_vignetting_impl.1} parent=1 // pred_check_branch
      %30 = sbr.rel (0) target = $region25
    $region24: #{_vignetting_impl.1} parent=1 // pred_region
      %31 = dma.done [#allocation3], 16
    $region25: #{_vignetting_impl.1} parent=1 // pred_fallthru
      _
    %32 = sfence
    %s33 = sld [smem:[#allocation2]]
    %s34 = sld [smem:[#allocation2 + $0x1]]
    %s35 = sld [smem:[#allocation2 + $0x2]]
    %v36 = vld [vmem:[%s2] sm:$0xff]
    %v37 = vld [vmem:[%s3] sm:$0xff]
    %v38 = vmul.f32 %v36, %v36
    %v39 = vmul.f32 %v37, %v37
    %v40 = vadd.f32 %v38, %v39
    %v41 = vstv %s35
    %v42 = vmul.f32 %v40, %v41
    %v43 = vstv %s34
    %v44 = vadd.f32 %v43, %v42
    %v45 = vmul.f32 %v40, %v44
    %v46 = vstv %s33
    %v47 = vadd.f32 %v46, %v45
    %v48 = vmul.f32 %v40, %v47
    %v49 = vadd.f32 %v48, 1.0
    %v50 = vld [vmem:[%s1] sm:$0xff]
    %v51 = vld [vmem:[%s1 + $0x8] sm:$0xff]
    %v52 = vld [vmem:[%s1 + $0x10] sm:$0xff]
    %v53 = vld [vmem:[%s1 + $0x18] sm:$0xff]
    %v54 = vld [vmem:[%s1 + $0x20] sm:$0xff]
    %v55 = vld [vmem:[%s1 + $0x28] sm:$0xff]
    %v56 = vld [vmem:[%s1 + $0x30] sm:$0xff]
    %v57 = vld [vmem:[%s1 + $0x38] sm:$0xff]
    %v58 = vld [vmem:[%s1 + $0x40] sm:$0xff]
    %v59 = vld [vmem:[%s1 + $0x48] sm:$0xff]
    %v60 = vld [vmem:[%s1 + $0x50] sm:$0xff]
    %v61 = vld [vmem:[%s1 + $0x58] sm:$0xff]
    %v62 = vld [vmem:[%s1 + $0x60] sm:$0xff]
    %v63 = vld [vmem:[%s1 + $0x68] sm:$0xff]
    %v64 = vld [vmem:[%s1 + $0x70] sm:$0xff]
    %v65 = vld [vmem:[%s1 + $0x78] sm:$0xff]
    %v66 = vld [vmem:[%s1 + $0x80] sm:$0xff]
    %v67 = vld [vmem:[%s1 + $0x88] sm:$0xff]
    %v68 = vld [vmem:[%s1 + $0x90] sm:$0xff]
    %v69 = vld [vmem:[%s1 + $0x98] sm:$0xff]
    %v70 = vld [vmem:[%s1 + $0xa0] sm:$0xff]
    %v71 = vld [vmem:[%s1 + $0xa8] sm:$0xff]
    %v72 = vld [vmem:[%s1 + $0xb0] sm:$0xff]
    %v73 = vld [vmem:[%s1 + $0xb8] sm:$0xff]
    %v74 = vld [vmem:[%s1 + $0xc0] sm:$0xff]
    %v75 = vld [vmem:[%s1 + $0xc8] sm:$0xff]
    %v76 = vld [vmem:[%s1 + $0xd0] sm:$0xff]
    %v77 = vld [vmem:[%s1 + $0xd8] sm:$0xff]
    %v78 = vld [vmem:[%s1 + $0xe0] sm:$0xff]
    %v79 = vld [vmem:[%s1 + $0xe8] sm:$0xff]
    %v80 = vld [vmem:[%s1 + $0xf0] sm:$0xff]
    %v81 = vld [vmem:[%s1 + $0xf8] sm:$0xff]
    %v82 = vld [vmem:[%s1 + $0x100] sm:$0xff]
    %v83 = vld [vmem:[%s1 + $0x108] sm:$0xff]
    %v84 = vld [vmem:[%s1 + $0x110] sm:$0xff]
    %v85 = vld [vmem:[%s1 + $0x118] sm:$0xff]
    %v86 = vld [vmem:[%s1 + $0x120] sm:$0xff]
    %v87 = vld [vmem:[%s1 + $0x128] sm:$0xff]
    %v88 = vld [vmem:[%s1 + $0x130] sm:$0xff]
    %v89 = vld [vmem:[%s1 + $0x138] sm:$0xff]
    %v90 = vld [vmem:[%s1 + $0x140] sm:$0xff]
    %v91 = vld [vmem:[%s1 + $0x148] sm:$0xff]
    %v92 = vld [vmem:[%s1 + $0x150] sm:$0xff]
    %v93 = vld [vmem:[%s1 + $0x158] sm:$0xff]
    %v94 = vld [vmem:[%s1 + $0x160] sm:$0xff]
    %v95 = vld [vmem:[%s1 + $0x168] sm:$0xff]
    %v96 = vld [vmem:[%s1 + $0x170] sm:$0xff]
    %v97 = vld [vmem:[%s1 + $0x178] sm:$0xff]
    %v98 = vand.u32 %v51, 4294901760
    %99 = vmatprep.subr.mxu0 %v98
    %v100 = vand.u32 %v50, 4294901760
    %101 = vmatpush1.msra.mxu0 %v100
    %v102 = vand.u32 %v54, 4294901760
    %103 = vmatprep.subr.mxu0 %v102
    %v104 = vand.u32 %v53, 4294901760
    %105 = vmatpush1.msra.mxu0 %v104
    %v106 = vand.u32 %v57, 4294901760
    %107 = vmatprep.subr.mxu0 %v106
    %v108 = vand.u32 %v56, 4294901760
    %109 = vmatpush1.msra.mxu0 %v108
    %v110 = vand.u32 %v60, 4294901760
    %111 = vmatprep.subr.mxu0 %v110
    %v112 = vand.u32 %v59, 4294901760
    %113 = vmatpush1.msra.mxu0 %v112
    %v114 = vand.u32 %v63, 4294901760
    %115 = vmatprep.subr.mxu0 %v114
    %v116 = vand.u32 %v62, 4294901760
    %117 = vmatpush1.msra.mxu0 %v116
    %v118 = vand.u32 %v66, 4294901760
    %119 = vmatprep.subr.mxu0 %v118
    %v120 = vand.u32 %v65, 4294901760
    %121 = vmatpush1.msra.mxu0 %v120
    %v122 = vand.u32 %v69, 4294901760
    %123 = vmatprep.subr.mxu0 %v122
    %v124 = vand.u32 %v68, 4294901760
    %125 = vmatpush1.msra.mxu0 %v124
    %v126 = vand.u32 %v72, 4294901760
    %127 = vmatprep.subr.mxu0 %v126
    %v128 = vand.u32 %v71, 4294901760
    %129 = vmatpush1.msra.mxu0 %v128
    %v130 = vand.u32 %v75, 4294901760
    %131 = vmatprep.subr.mxu0 %v130
    %v132 = vand.u32 %v74, 4294901760
    %133 = vmatpush1.msra.mxu0 %v132
    %v134 = vand.u32 %v78, 4294901760
    %135 = vmatprep.subr.mxu0 %v134
    %v136 = vand.u32 %v77, 4294901760
    %137 = vmatpush1.msra.mxu0 %v136
    %v138 = vand.u32 %v81, 4294901760
    %139 = vmatprep.subr.mxu0 %v138
    %v140 = vand.u32 %v80, 4294901760
    %141 = vmatpush1.msra.mxu0 %v140
    %v142 = vand.u32 %v84, 4294901760
    %143 = vmatprep.subr.mxu0 %v142
    %v144 = vand.u32 %v83, 4294901760
    %145 = vmatpush1.msra.mxu0 %v144
    %v146 = vand.u32 %v87, 4294901760
    %147 = vmatprep.subr.mxu0 %v146
    %v148 = vand.u32 %v86, 4294901760
    %149 = vmatpush1.msra.mxu0 %v148
    %v150 = vand.u32 %v90, 4294901760
    %151 = vmatprep.subr.mxu0 %v150
    %v152 = vand.u32 %v89, 4294901760
    %153 = vmatpush1.msra.mxu0 %v152
    %v154 = vand.u32 %v93, 4294901760
    %155 = vmatprep.subr.mxu0 %v154
    %v156 = vand.u32 %v92, 4294901760
    %157 = vmatpush1.msra.mxu0 %v156
    %v158 = vand.u32 %v96, 4294901760
    %159 = vmatprep.subr.mxu0 %v158
    %v160 = vand.u32 %v95, 4294901760
    %161 = vmatpush1.msra.mxu0 %v160
    %162 = vmatprep.subr.mxu0 0.0
    %163 = vmatpush1.msra.mxu0 0.0
    %164 = vmatprep.subr.mxu0 0.0
    %165 = vmatpush1.msra.mxu0 0.0
    %166 = vmatprep.subr.mxu0 0.0
    %167 = vmatpush1.msra.mxu0 0.0
    %168 = vmatprep.subr.mxu0 0.0
    %169 = vmatpush1.msra.mxu0 0.0
    %170 = vmatprep.subr.mxu0 0.0
    %171 = vmatpush1.msra.mxu0 0.0
    %172 = vmatprep.subr.mxu0 0.0
    %173 = vmatpush1.msra.mxu0 0.0
    %174 = vmatprep.subr.mxu0 0.0
    %175 = vmatpush1.msra.mxu0 0.0
    %176 = vmatprep.subr.mxu0 0.0
    %177 = vmatpush1.msra.mxu0 0.0
    %178 = vmatprep.subr.mxu0 0.0
    %179 = vmatpush1.msra.mxu0 0.0
    %180 = vmatprep.subr.mxu0 0.0
    %181 = vmatpush1.msra.mxu0 0.0
    %182 = vmatprep.subr.mxu0 0.0
    %183 = vmatpush1.msra.mxu0 0.0
    %184 = vmatprep.subr.mxu0 0.0
    %185 = vmatpush1.msra.mxu0 0.0
    %186 = vmatprep.subr.mxu0 0.0
    %187 = vmatpush1.msra.mxu0 0.0
    %188 = vmatprep.subr.mxu0 0.0
    %189 = vmatpush1.msra.mxu0 0.0
    %190 = vmatprep.subr.mxu0 0.0
    %191 = vmatpush1.msra.mxu0 0.0
    %192 = vmatprep.subr.mxu0 0.0
    %193 = vmatpush1.msra.mxu0 0.0
    %194 = vmatprep.mubr.f32.mxu0 0.0
    %v195 = vand.u32 %v49, 4294901760
    %v196 = vsub.f32 %v49, %v195
    %v197 = vand.u32 %v196, 4294901760
    %v198 = vsub.f32 %v196, %v197
    %v199 = vand.u32 %v198, 4294901760
    %200 = vmatmul.mubr.f32.gmra.mrb[0].mxu0 %v199
    %v201 = vpop.f32.mrb[0].mxu0
    %v202 = vadd.f32 0.0, %v201
    %v203 = vpop.f32.mrb[0].mxu0
    %v204 = vadd.f32 0.0, %v203
    %205 = vdwg.mxu0
    %v206 = vand.u32 %v51, 4294901760
    %v207 = vsub.f32 %v51, %v206
    %v208 = vand.u32 %v207, 4294901760
    %v209 = vsub.f32 %v207, %v208
    %v210 = vand.u32 %v209, 4294901760
    %211 = vmatprep.subr.mxu0 %v210
    %v212 = vand.u32 %v50, 4294901760
    %v213 = vsub.f32 %v50, %v212
    %v214 = vand.u32 %v213, 4294901760
    %v215 = vsub.f32 %v213, %v214
    %v216 = vand.u32 %v215, 4294901760
    %217 = vmatpush1.msra.mxu0 %v216
    %v218 = vand.u32 %v54, 4294901760
    %v219 = vsub.f32 %v54, %v218
    %v220 = vand.u32 %v219, 4294901760
    %v221 = vsub.f32 %v219, %v220
    %v222 = vand.u32 %v221, 4294901760
    %223 = vmatprep.subr.mxu0 %v222
    %v224 = vand.u32 %v53, 4294901760
    %v225 = vsub.f32 %v53, %v224
    %v226 = vand.u32 %v225, 4294901760
    %v227 = vsub.f32 %v225, %v226
    %v228 = vand.u32 %v227, 4294901760
    %229 = vmatpush1.msra.mxu0 %v228
    %v230 = vand.u32 %v57, 4294901760
    %v231 = vsub.f32 %v57, %v230
    %v232 = vand.u32 %v231, 4294901760
    %v233 = vsub.f32 %v231, %v232
    %v234 = vand.u32 %v233, 4294901760
    %235 = vmatprep.subr.mxu0 %v234
    %v236 = vand.u32 %v56, 4294901760
    %v237 = vsub.f32 %v56, %v236
    %v238 = vand.u32 %v237, 4294901760
    %v239 = vsub.f32 %v237, %v238
    %v240 = vand.u32 %v239, 4294901760
    %241 = vmatpush1.msra.mxu0 %v240
    %v242 = vand.u32 %v60, 4294901760
    %v243 = vsub.f32 %v60, %v242
    %v244 = vand.u32 %v243, 4294901760
    %v245 = vsub.f32 %v243, %v244
    %v246 = vand.u32 %v245, 4294901760
    %247 = vmatprep.subr.mxu0 %v246
    %v248 = vand.u32 %v59, 4294901760
    %v249 = vsub.f32 %v59, %v248
    %v250 = vand.u32 %v249, 4294901760
    %v251 = vsub.f32 %v249, %v250
    %v252 = vand.u32 %v251, 4294901760
    %253 = vmatpush1.msra.mxu0 %v252
    %v254 = vand.u32 %v63, 4294901760
    %v255 = vsub.f32 %v63, %v254
    %v256 = vand.u32 %v255, 4294901760
    %v257 = vsub.f32 %v255, %v256
    %v258 = vand.u32 %v257, 4294901760
    %259 = vmatprep.subr.mxu0 %v258
    %v260 = vand.u32 %v62, 4294901760
    %v261 = vsub.f32 %v62, %v260
    %v262 = vand.u32 %v261, 4294901760
    %v263 = vsub.f32 %v261, %v262
    %v264 = vand.u32 %v263, 4294901760
    %265 = vmatpush1.msra.mxu0 %v264
    %v266 = vand.u32 %v66, 4294901760
    %v267 = vsub.f32 %v66, %v266
    %v268 = vand.u32 %v267, 4294901760
    %v269 = vsub.f32 %v267, %v268
    %v270 = vand.u32 %v269, 4294901760
    %271 = vmatprep.subr.mxu0 %v270
    %v272 = vand.u32 %v65, 4294901760
    %v273 = vsub.f32 %v65, %v272
    %v274 = vand.u32 %v273, 4294901760
    %v275 = vsub.f32 %v273, %v274
    %v276 = vand.u32 %v275, 4294901760
    %277 = vmatpush1.msra.mxu0 %v276
    %v278 = vand.u32 %v69, 4294901760
    %v279 = vsub.f32 %v69, %v278
    %v280 = vand.u32 %v279, 4294901760
    %v281 = vsub.f32 %v279, %v280
    %v282 = vand.u32 %v281, 4294901760
    %283 = vmatprep.subr.mxu0 %v282
    %v284 = vand.u32 %v68, 4294901760
    %v285 = vsub.f32 %v68, %v284
    %v286 = vand.u32 %v285, 4294901760
    %v287 = vsub.f32 %v285, %v286
    %v288 = vand.u32 %v287, 4294901760
    %289 = vmatpush1.msra.mxu0 %v288
    %v290 = vand.u32 %v72, 4294901760
    %v291 = vsub.f32 %v72, %v290
    %v292 = vand.u32 %v291, 4294901760
    %v293 = vsub.f32 %v291, %v292
    %v294 = vand.u32 %v293, 4294901760
    %295 = vmatprep.subr.mxu0 %v294
    %v296 = vand.u32 %v71, 4294901760
    %v297 = vsub.f32 %v71, %v296
    %v298 = vand.u32 %v297, 4294901760
    %v299 = vsub.f32 %v297, %v298
    %v300 = vand.u32 %v299, 4294901760
    %301 = vmatpush1.msra.mxu0 %v300
    %v302 = vand.u32 %v75, 4294901760
    %v303 = vsub.f32 %v75, %v302
    %v304 = vand.u32 %v303, 4294901760
    %v305 = vsub.f32 %v303, %v304
    %v306 = vand.u32 %v305, 4294901760
    %307 = vmatprep.subr.mxu0 %v306
    %v308 = vand.u32 %v74, 4294901760
    %v309 = vsub.f32 %v74, %v308
    %v310 = vand.u32 %v309, 4294901760
    %v311 = vsub.f32 %v309, %v310
    %v312 = vand.u32 %v311, 4294901760
    %313 = vmatpush1.msra.mxu0 %v312
    %v314 = vand.u32 %v78, 4294901760
    %v315 = vsub.f32 %v78, %v314
    %v316 = vand.u32 %v315, 4294901760
    %v317 = vsub.f32 %v315, %v316
    %v318 = vand.u32 %v317, 4294901760
    %319 = vmatprep.subr.mxu0 %v318
    %v320 = vand.u32 %v77, 4294901760
    %v321 = vsub.f32 %v77, %v320
    %v322 = vand.u32 %v321, 4294901760
    %v323 = vsub.f32 %v321, %v322
    %v324 = vand.u32 %v323, 4294901760
    %325 = vmatpush1.msra.mxu0 %v324
    %v326 = vand.u32 %v81, 4294901760
    %v327 = vsub.f32 %v81, %v326
    %v328 = vand.u32 %v327, 4294901760
    %v329 = vsub.f32 %v327, %v328
    %v330 = vand.u32 %v329, 4294901760
    %331 = vmatprep.subr.mxu0 %v330
    %v332 = vand.u32 %v80, 4294901760
    %v333 = vsub.f32 %v80, %v332
    %v334 = vand.u32 %v333, 4294901760
    %v335 = vsub.f32 %v333, %v334
    %v336 = vand.u32 %v335, 4294901760
    %337 = vmatpush1.msra.mxu0 %v336
    %v338 = vand.u32 %v84, 4294901760
    %v339 = vsub.f32 %v84, %v338
    %v340 = vand.u32 %v339, 4294901760
    %v341 = vsub.f32 %v339, %v340
    %v342 = vand.u32 %v341, 4294901760
    %343 = vmatprep.subr.mxu0 %v342
    %v344 = vand.u32 %v83, 4294901760
    %v345 = vsub.f32 %v83, %v344
    %v346 = vand.u32 %v345, 4294901760
    %v347 = vsub.f32 %v345, %v346
    %v348 = vand.u32 %v347, 4294901760
    %349 = vmatpush1.msra.mxu0 %v348
    %v350 = vand.u32 %v87, 4294901760
    %v351 = vsub.f32 %v87, %v350
    %v352 = vand.u32 %v351, 4294901760
    %v353 = vsub.f32 %v351, %v352
    %v354 = vand.u32 %v353, 4294901760
    %355 = vmatprep.subr.mxu0 %v354
    %v356 = vand.u32 %v86, 4294901760
    %v357 = vsub.f32 %v86, %v356
    %v358 = vand.u32 %v357, 4294901760
    %v359 = vsub.f32 %v357, %v358
    %v360 = vand.u32 %v359, 4294901760
    %361 = vmatpush1.msra.mxu0 %v360
    %v362 = vand.u32 %v90, 4294901760
    %v363 = vsub.f32 %v90, %v362
    %v364 = vand.u32 %v363, 4294901760
    %v365 = vsub.f32 %v363, %v364
    %v366 = vand.u32 %v365, 4294901760
    %367 = vmatprep.subr.mxu0 %v366
    %v368 = vand.u32 %v89, 4294901760
    %v369 = vsub.f32 %v89, %v368
    %v370 = vand.u32 %v369, 4294901760
    %v371 = vsub.f32 %v369, %v370
    %v372 = vand.u32 %v371, 4294901760
    %373 = vmatpush1.msra.mxu0 %v372
    %v374 = vand.u32 %v93, 4294901760
    %v375 = vsub.f32 %v93, %v374
    %v376 = vand.u32 %v375, 4294901760
    %v377 = vsub.f32 %v375, %v376
    %v378 = vand.u32 %v377, 4294901760
    %379 = vmatprep.subr.mxu0 %v378
    %v380 = vand.u32 %v92, 4294901760
    %v381 = vsub.f32 %v92, %v380
    %v382 = vand.u32 %v381, 4294901760
    %v383 = vsub.f32 %v381, %v382
    %v384 = vand.u32 %v383, 4294901760
    %385 = vmatpush1.msra.mxu0 %v384
    %v386 = vand.u32 %v96, 4294901760
    %v387 = vsub.f32 %v96, %v386
    %v388 = vand.u32 %v387, 4294901760
    %v389 = vsub.f32 %v387, %v388
    %v390 = vand.u32 %v389, 4294901760
    %391 = vmatprep.subr.mxu0 %v390
    %v392 = vand.u32 %v95, 4294901760
    %v393 = vsub.f32 %v95, %v392
    %v394 = vand.u32 %v393, 4294901760
    %v395 = vsub.f32 %v393, %v394
    %v396 = vand.u32 %v395, 4294901760
    %397 = vmatpush1.msra.mxu0 %v396
    %398 = vmatprep.subr.mxu0 0.0
    %399 = vmatpush1.msra.mxu0 0.0
    %400 = vmatprep.subr.mxu0 0.0
    %401 = vmatpush1.msra.mxu0 0.0
    %402 = vmatprep.subr.mxu0 0.0
    %403 = vmatpush1.msra.mxu0 0.0
    %404 = vmatprep.subr.mxu0 0.0
    %405 = vmatpush1.msra.mxu0 0.0
    %406 = vmatprep.subr.mxu0 0.0
    %407 = vmatpush1.msra.mxu0 0.0
    %408 = vmatprep.subr.mxu0 0.0
    %409 = vmatpush1.msra.mxu0 0.0
    %410 = vmatprep.subr.mxu0 0.0
    %411 = vmatpush1.msra.mxu0 0.0
    %412 = vmatprep.subr.mxu0 0.0
    %413 = vmatpush1.msra.mxu0 0.0
    %414 = vmatprep.subr.mxu0 0.0
    %415 = vmatpush1.msra.mxu0 0.0
    %416 = vmatprep.subr.mxu0 0.0
    %417 = vmatpush1.msra.mxu0 0.0
    %418 = vmatprep.subr.mxu0 0.0
    %419 = vmatpush1.msra.mxu0 0.0
    %420 = vmatprep.subr.mxu0 0.0
    %421 = vmatpush1.msra.mxu0 0.0
    %422 = vmatprep.subr.mxu0 0.0
    %423 = vmatpush1.msra.mxu0 0.0
    %424 = vmatprep.subr.mxu0 0.0
    %425 = vmatpush1.msra.mxu0 0.0
    %426 = vmatprep.subr.mxu0 0.0
    %427 = vmatpush1.msra.mxu0 0.0
    %428 = vmatprep.subr.mxu0 0.0
    %429 = vmatpush1.msra.mxu0 0.0
    %430 = vmatprep.mubr.f32.mxu0 0.0
    %v431 = vand.u32 %v49, 4294901760
    %432 = vmatmul.mubr.f32.gmra.mrb[0].mxu0 %v431
    %v433 = vpop.f32.mrb[0].mxu0
    %v434 = vadd.f32 %v202, %v433
    %v435 = vpop.f32.mrb[0].mxu0
    %v436 = vadd.f32 %v204, %v435
    %437 = vdwg.mxu0
    %v438 = vand.u32 %v51, 4294901760
    %v439 = vsub.f32 %v51, %v438
    %440 = vmatprep.subr.mxu0 %v439
    %v441 = vand.u32 %v50, 4294901760
    %v442 = vsub.f32 %v50, %v441
    %443 = vmatpush1.msra.mxu0 %v442
    %v444 = vand.u32 %v54, 4294901760
    %v445 = vsub.f32 %v54, %v444
    %446 = vmatprep.subr.mxu0 %v445
    %v447 = vand.u32 %v53, 4294901760
    %v448 = vsub.f32 %v53, %v447
    %449 = vmatpush1.msra.mxu0 %v448
    %v450 = vand.u32 %v57, 4294901760
    %v451 = vsub.f32 %v57, %v450
    %452 = vmatprep.subr.mxu0 %v451
    %v453 = vand.u32 %v56, 4294901760
    %v454 = vsub.f32 %v56, %v453
    %455 = vmatpush1.msra.mxu0 %v454
    %v456 = vand.u32 %v60, 4294901760
    %v457 = vsub.f32 %v60, %v456
    %458 = vmatprep.subr.mxu0 %v457
    %v459 = vand.u32 %v59, 4294901760
    %v460 = vsub.f32 %v59, %v459
    %461 = vmatpush1.msra.mxu0 %v460
    %v462 = vand.u32 %v63, 4294901760
    %v463 = vsub.f32 %v63, %v462
    %464 = vmatprep.subr.mxu0 %v463
    %v465 = vand.u32 %v62, 4294901760
    %v466 = vsub.f32 %v62, %v465
    %467 = vmatpush1.msra.mxu0 %v466
    %v468 = vand.u32 %v66, 4294901760
    %v469 = vsub.f32 %v66, %v468
    %470 = vmatprep.subr.mxu0 %v469
    %v471 = vand.u32 %v65, 4294901760
    %v472 = vsub.f32 %v65, %v471
    %473 = vmatpush1.msra.mxu0 %v472
    %v474 = vand.u32 %v69, 4294901760
    %v475 = vsub.f32 %v69, %v474
    %476 = vmatprep.subr.mxu0 %v475
    %v477 = vand.u32 %v68, 4294901760
    %v478 = vsub.f32 %v68, %v477
    %479 = vmatpush1.msra.mxu0 %v478
    %v480 = vand.u32 %v72, 4294901760
    %v481 = vsub.f32 %v72, %v480
    %482 = vmatprep.subr.mxu0 %v481
    %v483 = vand.u32 %v71, 4294901760
    %v484 = vsub.f32 %v71, %v483
    %485 = vmatpush1.msra.mxu0 %v484
    %v486 = vand.u32 %v75, 4294901760
    %v487 = vsub.f32 %v75, %v486
    %488 = vmatprep.subr.mxu0 %v487
    %v489 = vand.u32 %v74, 4294901760
    %v490 = vsub.f32 %v74, %v489
    %491 = vmatpush1.msra.mxu0 %v490
    %v492 = vand.u32 %v78, 4294901760
    %v493 = vsub.f32 %v78, %v492
    %494 = vmatprep.subr.mxu0 %v493
    %v495 = vand.u32 %v77, 4294901760
    %v496 = vsub.f32 %v77, %v495
    %497 = vmatpush1.msra.mxu0 %v496
    %v498 = vand.u32 %v81, 4294901760
    %v499 = vsub.f32 %v81, %v498
    %500 = vmatprep.subr.mxu0 %v499
    %v501 = vand.u32 %v80, 4294901760
    %v502 = vsub.f32 %v80, %v501
    %503 = vmatpush1.msra.mxu0 %v502
    %v504 = vand.u32 %v84, 4294901760
    %v505 = vsub.f32 %v84, %v504
    %506 = vmatprep.subr.mxu0 %v505
    %v507 = vand.u32 %v83, 4294901760
    %v508 = vsub.f32 %v83, %v507
    %509 = vmatpush1.msra.mxu0 %v508
    %v510 = vand.u32 %v87, 4294901760
    %v511 = vsub.f32 %v87, %v510
    %512 = vmatprep.subr.mxu0 %v511
    %v513 = vand.u32 %v86, 4294901760
    %v514 = vsub.f32 %v86, %v513
    %515 = vmatpush1.msra.mxu0 %v514
    %v516 = vand.u32 %v90, 4294901760
    %v517 = vsub.f32 %v90, %v516
    %518 = vmatprep.subr.mxu0 %v517
    %v519 = vand.u32 %v89, 4294901760
    %v520 = vsub.f32 %v89, %v519
    %521 = vmatpush1.msra.mxu0 %v520
    %v522 = vand.u32 %v93, 4294901760
    %v523 = vsub.f32 %v93, %v522
    %524 = vmatprep.subr.mxu0 %v523
    %v525 = vand.u32 %v92, 4294901760
    %v526 = vsub.f32 %v92, %v525
    %527 = vmatpush1.msra.mxu0 %v526
    %v528 = vand.u32 %v96, 4294901760
    %v529 = vsub.f32 %v96, %v528
    %530 = vmatprep.subr.mxu0 %v529
    %v531 = vand.u32 %v95, 4294901760
    %v532 = vsub.f32 %v95, %v531
    %533 = vmatpush1.msra.mxu0 %v532
    %534 = vmatprep.subr.mxu0 0.0
    %535 = vmatpush1.msra.mxu0 0.0
    %536 = vmatprep.subr.mxu0 0.0
    %537 = vmatpush1.msra.mxu0 0.0
    %538 = vmatprep.subr.mxu0 0.0
    %539 = vmatpush1.msra.mxu0 0.0
    %540 = vmatprep.subr.mxu0 0.0
    %541 = vmatpush1.msra.mxu0 0.0
    %542 = vmatprep.subr.mxu0 0.0
    %543 = vmatpush1.msra.mxu0 0.0
    %544 = vmatprep.subr.mxu0 0.0
    %545 = vmatpush1.msra.mxu0 0.0
    %546 = vmatprep.subr.mxu0 0.0
    %547 = vmatpush1.msra.mxu0 0.0
    %548 = vmatprep.subr.mxu0 0.0
    %549 = vmatpush1.msra.mxu0 0.0
    %550 = vmatprep.subr.mxu0 0.0
    %551 = vmatpush1.msra.mxu0 0.0
    %552 = vmatprep.subr.mxu0 0.0
    %553 = vmatpush1.msra.mxu0 0.0
    %554 = vmatprep.subr.mxu0 0.0
    %555 = vmatpush1.msra.mxu0 0.0
    %556 = vmatprep.subr.mxu0 0.0
    %557 = vmatpush1.msra.mxu0 0.0
    %558 = vmatprep.subr.mxu0 0.0
    %559 = vmatpush1.msra.mxu0 0.0
    %560 = vmatprep.subr.mxu0 0.0
    %561 = vmatpush1.msra.mxu0 0.0
    %562 = vmatprep.subr.mxu0 0.0
    %563 = vmatpush1.msra.mxu0 0.0
    %564 = vmatprep.subr.mxu0 0.0
    %565 = vmatpush1.msra.mxu0 0.0
    %566 = vmatprep.mubr.f32.mxu0 0.0
    %v567 = vand.u32 %v49, 4294901760
    %v568 = vsub.f32 %v49, %v567
    %569 = vmatmul.mubr.f32.gmra.mrb[0].mxu0 %v568
    %v570 = vpop.f32.mrb[0].mxu0
    %v571 = vadd.f32 %v434, %v570
    %v572 = vpop.f32.mrb[0].mxu0
    %v573 = vadd.f32 %v436, %v572
    %574 = vdwg.mxu0
    %v575 = vand.u32 %v51, 4294901760
    %576 = vmatprep.subr.mxu0 %v575
    %v577 = vand.u32 %v50, 4294901760
    %578 = vmatpush1.msra.mxu0 %v577
    %v579 = vand.u32 %v54, 4294901760
    %580 = vmatprep.subr.mxu0 %v579
    %v581 = vand.u32 %v53, 4294901760
    %582 = vmatpush1.msra.mxu0 %v581
    %v583 = vand.u32 %v57, 4294901760
    %584 = vmatprep.subr.mxu0 %v583
    %v585 = vand.u32 %v56, 4294901760
    %586 = vmatpush1.msra.mxu0 %v585
    %v587 = vand.u32 %v60, 4294901760
    %588 = vmatprep.subr.mxu0 %v587
    %v589 = vand.u32 %v59, 4294901760
    %590 = vmatpush1.msra.mxu0 %v589
    %v591 = vand.u32 %v63, 4294901760
    %592 = vmatprep.subr.mxu0 %v591
    %v593 = vand.u32 %v62, 4294901760
    %594 = vmatpush1.msra.mxu0 %v593
    %v595 = vand.u32 %v66, 4294901760
    %596 = vmatprep.subr.mxu0 %v595
    %v597 = vand.u32 %v65, 4294901760
    %598 = vmatpush1.msra.mxu0 %v597
    %v599 = vand.u32 %v69, 4294901760
    %600 = vmatprep.subr.mxu0 %v599
    %v601 = vand.u32 %v68, 4294901760
    %602 = vmatpush1.msra.mxu0 %v601
    %v603 = vand.u32 %v72, 4294901760
    %604 = vmatprep.subr.mxu0 %v603
    %v605 = vand.u32 %v71, 4294901760
    %606 = vmatpush1.msra.mxu0 %v605
    %v607 = vand.u32 %v75, 4294901760
    %608 = vmatprep.subr.mxu0 %v607
    %v609 = vand.u32 %v74, 4294901760
    %610 = vmatpush1.msra.mxu0 %v609
    %v611 = vand.u32 %v78, 4294901760
    %612 = vmatprep.subr.mxu0 %v611
    %v613 = vand.u32 %v77, 4294901760
    %614 = vmatpush1.msra.mxu0 %v613
    %v615 = vand.u32 %v81, 4294901760
    %616 = vmatprep.subr.mxu0 %v615
    %v617 = vand.u32 %v80, 4294901760
    %618 = vmatpush1.msra.mxu0 %v617
    %v619 = vand.u32 %v84, 4294901760
    %620 = vmatprep.subr.mxu0 %v619
    %v621 = vand.u32 %v83, 4294901760
    %622 = vmatpush1.msra.mxu0 %v621
    %v623 = vand.u32 %v87, 4294901760
    %624 = vmatprep.subr.mxu0 %v623
    %v625 = vand.u32 %v86, 4294901760
    %626 = vmatpush1.msra.mxu0 %v625
    %v627 = vand.u32 %v90, 4294901760
    %628 = vmatprep.subr.mxu0 %v627
    %v629 = vand.u32 %v89, 4294901760
    %630 = vmatpush1.msra.mxu0 %v629
    %v631 = vand.u32 %v93, 4294901760
    %632 = vmatprep.subr.mxu0 %v631
    %v633 = vand.u32 %v92, 4294901760
    %634 = vmatpush1.msra.mxu0 %v633
    %v635 = vand.u32 %v96, 4294901760
    %636 = vmatprep.subr.mxu0 %v635
    %v637 = vand.u32 %v95, 4294901760
    %638 = vmatpush1.msra.mxu0 %v637
    %639 = vmatprep.subr.mxu0 0.0
    %640 = vmatpush1.msra.mxu0 0.0
    %641 = vmatprep.subr.mxu0 0.0
    %642 = vmatpush1.msra.mxu0 0.0
    %643 = vmatprep.subr.mxu0 0.0
    %644 = vmatpush1.msra.mxu0 0.0
    %645 = vmatprep.subr.mxu0 0.0
    %646 = vmatpush1.msra.mxu0 0.0
    %647 = vmatprep.subr.mxu0 0.0
    %648 = vmatpush1.msra.mxu0 0.0
    %649 = vmatprep.subr.mxu0 0.0
    %650 = vmatpush1.msra.mxu0 0.0
    %651 = vmatprep.subr.mxu0 0.0
    %652 = vmatpush1.msra.mxu0 0.0
    %653 = vmatprep.subr.mxu0 0.0
    %654 = vmatpush1.msra.mxu0 0.0
    %655 = vmatprep.subr.mxu0 0.0
    %656 = vmatpush1.msra.mxu0 0.0
    %657 = vmatprep.subr.mxu0 0.0
    %658 = vmatpush1.msra.mxu0 0.0
    %659 = vmatprep.subr.mxu0 0.0
    %660 = vmatpush1.msra.mxu0 0.0
    %661 = vmatprep.subr.mxu0 0.0
    %662 = vmatpush1.msra.mxu0 0.0
    %663 = vmatprep.subr.mxu0 0.0
    %664 = vmatpush1.msra.mxu0 0.0
    %665 = vmatprep.subr.mxu0 0.0
    %666 = vmatpush1.msra.mxu0 0.0
    %667 = vmatprep.subr.mxu0 0.0
    %668 = vmatpush1.msra.mxu0 0.0
    %669 = vmatprep.subr.mxu0 0.0
    %670 = vmatpush1.msra.mxu0 0.0
    %671 = vmatprep.mubr.f32.mxu0 0.0
    %v672 = vand.u32 %v49, 4294901760
    %v673 = vsub.f32 %v49, %v672
    %v674 = vand.u32 %v673, 4294901760
    %675 = vmatmul.mubr.f32.gmra.mrb[0].mxu0 %v674
    %v676 = vpop.f32.mrb[0].mxu0
    %v677 = vadd.f32 %v571, %v676
    %v678 = vpop.f32.mrb[0].mxu0
    %v679 = vadd.f32 %v573, %v678
    %680 = vdwg.mxu0
    %v681 = vand.u32 %v51, 4294901760
    %v682 = vsub.f32 %v51, %v681
    %v683 = vand.u32 %v682, 4294901760
    %684 = vmatprep.subr.mxu0 %v683
    %v685 = vand.u32 %v50, 4294901760
    %v686 = vsub.f32 %v50, %v685
    %v687 = vand.u32 %v686, 4294901760
    %688 = vmatpush1.msra.mxu0 %v687
    %v689 = vand.u32 %v54, 4294901760
    %v690 = vsub.f32 %v54, %v689
    %v691 = vand.u32 %v690, 4294901760
    %692 = vmatprep.subr.mxu0 %v691
    %v693 = vand.u32 %v53, 4294901760
    %v694 = vsub.f32 %v53, %v693
    %v695 = vand.u32 %v694, 4294901760
    %696 = vmatpush1.msra.mxu0 %v695
    %v697 = vand.u32 %v57, 4294901760
    %v698 = vsub.f32 %v57, %v697
    %v699 = vand.u32 %v698, 4294901760
    %700 = vmatprep.subr.mxu0 %v699
    %v701 = vand.u32 %v56, 4294901760
    %v702 = vsub.f32 %v56, %v701
    %v703 = vand.u32 %v702, 4294901760
    %704 = vmatpush1.msra.mxu0 %v703
    %v705 = vand.u32 %v60, 4294901760
    %v706 = vsub.f32 %v60, %v705
    %v707 = vand.u32 %v706, 4294901760
    %708 = vmatprep.subr.mxu0 %v707
    %v709 = vand.u32 %v59, 4294901760
    %v710 = vsub.f32 %v59, %v709
    %v711 = vand.u32 %v710, 4294901760
    %712 = vmatpush1.msra.mxu0 %v711
    %v713 = vand.u32 %v63, 4294901760
    %v714 = vsub.f32 %v63, %v713
    %v715 = vand.u32 %v714, 4294901760
    %716 = vmatprep.subr.mxu0 %v715
    %v717 = vand.u32 %v62, 4294901760
    %v718 = vsub.f32 %v62, %v717
    %v719 = vand.u32 %v718, 4294901760
    %720 = vmatpush1.msra.mxu0 %v719
    %v721 = vand.u32 %v66, 4294901760
    %v722 = vsub.f32 %v66, %v721
    %v723 = vand.u32 %v722, 4294901760
    %724 = vmatprep.subr.mxu0 %v723
    %v725 = vand.u32 %v65, 4294901760
    %v726 = vsub.f32 %v65, %v725
    %v727 = vand.u32 %v726, 4294901760
    %728 = vmatpush1.msra.mxu0 %v727
    %v729 = vand.u32 %v69, 4294901760
    %v730 = vsub.f32 %v69, %v729
    %v731 = vand.u32 %v730, 4294901760
    %732 = vmatprep.subr.mxu0 %v731
    %v733 = vand.u32 %v68, 4294901760
    %v734 = vsub.f32 %v68, %v733
    %v735 = vand.u32 %v734, 4294901760
    %736 = vmatpush1.msra.mxu0 %v735
    %v737 = vand.u32 %v72, 4294901760
    %v738 = vsub.f32 %v72, %v737
    %v739 = vand.u32 %v738, 4294901760
    %740 = vmatprep.subr.mxu0 %v739
    %v741 = vand.u32 %v71, 4294901760
    %v742 = vsub.f32 %v71, %v741
    %v743 = vand.u32 %v742, 4294901760
    %744 = vmatpush1.msra.mxu0 %v743
    %v745 = vand.u32 %v75, 4294901760
    %v746 = vsub.f32 %v75, %v745
    %v747 = vand.u32 %v746, 4294901760
    %748 = vmatprep.subr.mxu0 %v747
    %v749 = vand.u32 %v74, 4294901760
    %v750 = vsub.f32 %v74, %v749
    %v751 = vand.u32 %v750, 4294901760
    %752 = vmatpush1.msra.mxu0 %v751
    %v753 = vand.u32 %v78, 4294901760
    %v754 = vsub.f32 %v78, %v753
    %v755 = vand.u32 %v754, 4294901760
    %756 = vmatprep.subr.mxu0 %v755
    %v757 = vand.u32 %v77, 4294901760
    %v758 = vsub.f32 %v77, %v757
    %v759 = vand.u32 %v758, 4294901760
    %760 = vmatpush1.msra.mxu0 %v759
    %v761 = vand.u32 %v81, 4294901760
    %v762 = vsub.f32 %v81, %v761
    %v763 = vand.u32 %v762, 4294901760
    %764 = vmatprep.subr.mxu0 %v763
    %v765 = vand.u32 %v80, 4294901760
    %v766 = vsub.f32 %v80, %v765
    %v767 = vand.u32 %v766, 4294901760
    %768 = vmatpush1.msra.mxu0 %v767
    %v769 = vand.u32 %v84, 4294901760
    %v770 = vsub.f32 %v84, %v769
    %v771 = vand.u32 %v770, 4294901760
    %772 = vmatprep.subr.mxu0 %v771
    %v773 = vand.u32 %v83, 4294901760
    %v774 = vsub.f32 %v83, %v773
    %v775 = vand.u32 %v774, 4294901760
    %776 = vmatpush1.msra.mxu0 %v775
    %v777 = vand.u32 %v87, 4294901760
    %v778 = vsub.f32 %v87, %v777
    %v779 = vand.u32 %v778, 4294901760
    %780 = vmatprep.subr.mxu0 %v779
    %v781 = vand.u32 %v86, 4294901760
    %v782 = vsub.f32 %v86, %v781
    %v783 = vand.u32 %v782, 4294901760
    %784 = vmatpush1.msra.mxu0 %v783
    %v785 = vand.u32 %v90, 4294901760
    %v786 = vsub.f32 %v90, %v785
    %v787 = vand.u32 %v786, 4294901760
    %788 = vmatprep.subr.mxu0 %v787
    %v789 = vand.u32 %v89, 4294901760
    %v790 = vsub.f32 %v89, %v789
    %v791 = vand.u32 %v790, 4294901760
    %792 = vmatpush1.msra.mxu0 %v791
    %v793 = vand.u32 %v93, 4294901760
    %v794 = vsub.f32 %v93, %v793
    %v795 = vand.u32 %v794, 4294901760
    %796 = vmatprep.subr.mxu0 %v795
    %v797 = vand.u32 %v92, 4294901760
    %v798 = vsub.f32 %v92, %v797
    %v799 = vand.u32 %v798, 4294901760
    %800 = vmatpush1.msra.mxu0 %v799
    %v801 = vand.u32 %v96, 4294901760
    %v802 = vsub.f32 %v96, %v801
    %v803 = vand.u32 %v802, 4294901760
    %804 = vmatprep.subr.mxu0 %v803
    %v805 = vand.u32 %v95, 4294901760
    %v806 = vsub.f32 %v95, %v805
    %v807 = vand.u32 %v806, 4294901760
    %808 = vmatpush1.msra.mxu0 %v807
    %809 = vmatprep.subr.mxu0 0.0
    %810 = vmatpush1.msra.mxu0 0.0
    %811 = vmatprep.subr.mxu0 0.0
    %812 = vmatpush1.msra.mxu0 0.0
    %813 = vmatprep.subr.mxu0 0.0
    %814 = vmatpush1.msra.mxu0 0.0
    %815 = vmatprep.subr.mxu0 0.0
    %816 = vmatpush1.msra.mxu0 0.0
    %817 = vmatprep.subr.mxu0 0.0
    %818 = vmatpush1.msra.mxu0 0.0
    %819 = vmatprep.subr.mxu0 0.0
    %820 = vmatpush1.msra.mxu0 0.0
    %821 = vmatprep.subr.mxu0 0.0
    %822 = vmatpush1.msra.mxu0 0.0
    %823 = vmatprep.subr.mxu0 0.0
    %824 = vmatpush1.msra.mxu0 0.0
    %825 = vmatprep.subr.mxu0 0.0
    %826 = vmatpush1.msra.mxu0 0.0
    %827 = vmatprep.subr.mxu0 0.0
    %828 = vmatpush1.msra.mxu0 0.0
    %829 = vmatprep.subr.mxu0 0.0
    %830 = vmatpush1.msra.mxu0 0.0
    %831 = vmatprep.subr.mxu0 0.0
    %832 = vmatpush1.msra.mxu0 0.0
    %833 = vmatprep.subr.mxu0 0.0
    %834 = vmatpush1.msra.mxu0 0.0
    %835 = vmatprep.subr.mxu0 0.0
    %836 = vmatpush1.msra.mxu0 0.0
    %837 = vmatprep.subr.mxu0 0.0
    %838 = vmatpush1.msra.mxu0 0.0
    %839 = vmatprep.subr.mxu0 0.0
    %840 = vmatpush1.msra.mxu0 0.0
    %841 = vmatprep.mubr.f32.mxu0 0.0
    %v842 = vand.u32 %v49, 4294901760
    %843 = vmatmul.mubr.f32.gmra.mrb[0].mxu0 %v842
    %v844 = vpop.f32.mrb[0].mxu0
    %v845 = vadd.f32 %v677, %v844
    %v846 = vpop.f32.mrb[0].mxu0
    %v847 = vadd.f32 %v679, %v846
    %848 = vdwg.mxu0
    %v849 = vand.u32 %v51, 4294901760
    %850 = vmatprep.subr.mxu0 %v849
    %v851 = vand.u32 %v50, 4294901760
    %852 = vmatpush1.msra.mxu0 %v851
    %v853 = vand.u32 %v54, 4294901760
    %854 = vmatprep.subr.mxu0 %v853
    %v855 = vand.u32 %v53, 4294901760
    %856 = vmatpush1.msra.mxu0 %v855
    %v857 = vand.u32 %v57, 4294901760
    %858 = vmatprep.subr.mxu0 %v857
    %v859 = vand.u32 %v56, 4294901760
    %860 = vmatpush1.msra.mxu0 %v859
    %v861 = vand.u32 %v60, 4294901760
    %862 = vmatprep.subr.mxu0 %v861
    %v863 = vand.u32 %v59, 4294901760
    %864 = vmatpush1.msra.mxu0 %v863
    %v865 = vand.u32 %v63, 4294901760
    %866 = vmatprep.subr.mxu0 %v865
    %v867 = vand.u32 %v62, 4294901760
    %868 = vmatpush1.msra.mxu0 %v867
    %v869 = vand.u32 %v66, 4294901760
    %870 = vmatprep.subr.mxu0 %v869
    %v871 = vand.u32 %v65, 4294901760
    %872 = vmatpush1.msra.mxu0 %v871
    %v873 = vand.u32 %v69, 4294901760
    %874 = vmatprep.subr.mxu0 %v873
    %v875 = vand.u32 %v68, 4294901760
    %876 = vmatpush1.msra.mxu0 %v875
    %v877 = vand.u32 %v72, 4294901760
    %878 = vmatprep.subr.mxu0 %v877
    %v879 = vand.u32 %v71, 4294901760
    %880 = vmatpush1.msra.mxu0 %v879
    %v881 = vand.u32 %v75, 4294901760
    %882 = vmatprep.subr.mxu0 %v881
    %v883 = vand.u32 %v74, 4294901760
    %884 = vmatpush1.msra.mxu0 %v883
    %v885 = vand.u32 %v78, 4294901760
    %886 = vmatprep.subr.mxu0 %v885
    %v887 = vand.u32 %v77, 4294901760
    %888 = vmatpush1.msra.mxu0 %v887
    %v889 = vand.u32 %v81, 4294901760
    %890 = vmatprep.subr.mxu0 %v889
    %v891 = vand.u32 %v80, 4294901760
    %892 = vmatpush1.msra.mxu0 %v891
    %v893 = vand.u32 %v84, 4294901760
    %894 = vmatprep.subr.mxu0 %v893
    %v895 = vand.u32 %v83, 4294901760
    %896 = vmatpush1.msra.mxu0 %v895
    %v897 = vand.u32 %v87, 4294901760
    %898 = vmatprep.subr.mxu0 %v897
    %v899 = vand.u32 %v86, 4294901760
    %900 = vmatpush1.msra.mxu0 %v899
    %v901 = vand.u32 %v90, 4294901760
    %902 = vmatprep.subr.mxu0 %v901
    %v903 = vand.u32 %v89, 4294901760
    %904 = vmatpush1.msra.mxu0 %v903
    %v905 = vand.u32 %v93, 4294901760
    %906 = vmatprep.subr.mxu0 %v905
    %v907 = vand.u32 %v92, 4294901760
    %908 = vmatpush1.msra.mxu0 %v907
    %v909 = vand.u32 %v96, 4294901760
    %910 = vmatprep.subr.mxu0 %v909
    %v911 = vand.u32 %v95, 4294901760
    %912 = vmatpush1.msra.mxu0 %v911
    %913 = vmatprep.subr.mxu0 0.0
    %914 = vmatpush1.msra.mxu0 0.0
    %915 = vmatprep.subr.mxu0 0.0
    %916 = vmatpush1.msra.mxu0 0.0
    %917 = vmatprep.subr.mxu0 0.0
    %918 = vmatpush1.msra.mxu0 0.0
    %919 = vmatprep.subr.mxu0 0.0
    %920 = vmatpush1.msra.mxu0 0.0
    %921 = vmatprep.subr.mxu0 0.0
    %922 = vmatpush1.msra.mxu0 0.0
    %923 = vmatprep.subr.mxu0 0.0
    %924 = vmatpush1.msra.mxu0 0.0
    %925 = vmatprep.subr.mxu0 0.0
    %926 = vmatpush1.msra.mxu0 0.0
    %927 = vmatprep.subr.mxu0 0.0
    %928 = vmatpush1.msra.mxu0 0.0
    %929 = vmatprep.subr.mxu0 0.0
    %930 = vmatpush1.msra.mxu0 0.0
    %931 = vmatprep.subr.mxu0 0.0
    %932 = vmatpush1.msra.mxu0 0.0
    %933 = vmatprep.subr.mxu0 0.0
    %934 = vmatpush1.msra.mxu0 0.0
    %935 = vmatprep.subr.mxu0 0.0
    %936 = vmatpush1.msra.mxu0 0.0
    %937 = vmatprep.subr.mxu0 0.0
    %938 = vmatpush1.msra.mxu0 0.0
    %939 = vmatprep.subr.mxu0 0.0
    %940 = vmatpush1.msra.mxu0 0.0
    %941 = vmatprep.subr.mxu0 0.0
    %942 = vmatpush1.msra.mxu0 0.0
    %943 = vmatprep.subr.mxu0 0.0
    %944 = vmatpush1.msra.mxu0 0.0
    %945 = vmatprep.mubr.f32.mxu0 0.0
    %v946 = vand.u32 %v49, 4294901760
    %947 = vmatmul.mubr.f32.gmra.mrb[0].mxu0 %v946
    %v948 = vpop.f32.mrb[0].mxu0
    %v949 = vadd.f32 %v845, %v948
    %v950 = vpop.f32.mrb[0].mxu0
    %v951 = vadd.f32 %v847, %v950
    %952 = vdwg.mxu0
    %953 = vmatprep.subr.mxu0 0.0
    %v954 = vand.u32 %v52, 4294901760
    %955 = vmatpush1.msra.mxu0 %v954
    %956 = vmatprep.subr.mxu0 0.0
    %v957 = vand.u32 %v55, 4294901760
    %958 = vmatpush1.msra.mxu0 %v957
    %959 = vmatprep.subr.mxu0 0.0
    %v960 = vand.u32 %v58, 4294901760
    %961 = vmatpush1.msra.mxu0 %v960
    %962 = vmatprep.subr.mxu0 0.0
    %v963 = vand.u32 %v61, 4294901760
    %964 = vmatpush1.msra.mxu0 %v963
    %965 = vmatprep.subr.mxu0 0.0
    %v966 = vand.u32 %v64, 4294901760
    %967 = vmatpush1.msra.mxu0 %v966
    %968 = vmatprep.subr.mxu0 0.0
    %v969 = vand.u32 %v67, 4294901760
    %970 = vmatpush1.msra.mxu0 %v969
    %971 = vmatprep.subr.mxu0 0.0
    %v972 = vand.u32 %v70, 4294901760
    %973 = vmatpush1.msra.mxu0 %v972
    %974 = vmatprep.subr.mxu0 0.0
    %v975 = vand.u32 %v73, 4294901760
    %976 = vmatpush1.msra.mxu0 %v975
    %977 = vmatprep.subr.mxu0 0.0
    %v978 = vand.u32 %v76, 4294901760
    %979 = vmatpush1.msra.mxu0 %v978
    %980 = vmatprep.subr.mxu0 0.0
    %v981 = vand.u32 %v79, 4294901760
    %982 = vmatpush1.msra.mxu0 %v981
    %983 = vmatprep.subr.mxu0 0.0
    %v984 = vand.u32 %v82, 4294901760
    %985 = vmatpush1.msra.mxu0 %v984
    %986 = vmatprep.subr.mxu0 0.0
    %v987 = vand.u32 %v85, 4294901760
    %988 = vmatpush1.msra.mxu0 %v987
    %989 = vmatprep.subr.mxu0 0.0
    %v990 = vand.u32 %v88, 4294901760
    %991 = vmatpush1.msra.mxu0 %v990
    %992 = vmatprep.subr.mxu0 0.0
    %v993 = vand.u32 %v91, 4294901760
    %994 = vmatpush1.msra.mxu0 %v993
    %995 = vmatprep.subr.mxu0 0.0
    %v996 = vand.u32 %v94, 4294901760
    %997 = vmatpush1.msra.mxu0 %v996
    %998 = vmatprep.subr.mxu0 0.0
    %v999 = vand.u32 %v97, 4294901760
    %1000 = vmatpush1.msra.mxu0 %v999
    %1001 = vmatprep.subr.mxu0 0.0
    %1002 = vmatpush1.msra.mxu0 0.0
    %1003 = vmatprep.subr.mxu0 0.0
    %1004 = vmatpush1.msra.mxu0 0.0
    %1005 = vmatprep.subr.mxu0 0.0
    %1006 = vmatpush1.msra.mxu0 0.0
    %1007 = vmatprep.subr.mxu0 0.0
    %1008 = vmatpush1.msra.mxu0 0.0
    %1009 = vmatprep.subr.mxu0 0.0
    %1010 = vmatpush1.msra.mxu0 0.0
    %1011 = vmatprep.subr.mxu0 0.0
    %1012 = vmatpush1.msra.mxu0 0.0
    %1013 = vmatprep.subr.mxu0 0.0
    %1014 = vmatpush1.msra.mxu0 0.0
    %1015 = vmatprep.subr.mxu0 0.0
    %1016 = vmatpush1.msra.mxu0 0.0
    %1017 = vmatprep.subr.mxu0 0.0
    %1018 = vmatpush1.msra.mxu0 0.0
    %1019 = vmatprep.subr.mxu0 0.0
    %1020 = vmatpush1.msra.mxu0 0.0
    %1021 = vmatprep.subr.mxu0 0.0
    %1022 = vmatpush1.msra.mxu0 0.0
    %1023 = vmatprep.subr.mxu0 0.0
    %1024 = vmatpush1.msra.mxu0 0.0
    %1025 = vmatprep.subr.mxu0 0.0
    %1026 = vmatpush1.msra.mxu0 0.0
    %1027 = vmatprep.subr.mxu0 0.0
    %1028 = vmatpush1.msra.mxu0 0.0
    %1029 = vmatprep.subr.mxu0 0.0
    %1030 = vmatpush1.msra.mxu0 0.0
    %1031 = vmatprep.subr.mxu0 0.0
    %1032 = vmatpush1.msra.mxu0 0.0
    %1033 = vmatprep.mubr.f32.mxu0 0.0
    %v1034 = vand.u32 %v49, 4294901760
    %v1035 = vsub.f32 %v49, %v1034
    %v1036 = vand.u32 %v1035, 4294901760
    %v1037 = vsub.f32 %v1035, %v1036
    %v1038 = vand.u32 %v1037, 4294901760
    %1039 = vmatmul.mubr.f32.gmra.mrb[0].mxu0 %v1038
    %v1040 = vpop.f32.mrb[0].mxu0
    %v1041 = vadd.f32 0.0, %v1040
    %v1042 = vpop.f32.mrb[0].mxu0
    %1043 = vdwg.mxu0
    %1044 = vmatprep.subr.mxu0 0.0
    %v1045 = vand.u32 %v52, 4294901760
    %v1046 = vsub.f32 %v52, %v1045
    %v1047 = vand.u32 %v1046, 4294901760
    %v1048 = vsub.f32 %v1046, %v1047
    %v1049 = vand.u32 %v1048, 4294901760
    %1050 = vmatpush1.msra.mxu0 %v1049
    %1051 = vmatprep.subr.mxu0 0.0
    %v1052 = vand.u32 %v55, 4294901760
    %v1053 = vsub.f32 %v55, %v1052
    %v1054 = vand.u32 %v1053, 4294901760
    %v1055 = vsub.f32 %v1053, %v1054
    %v1056 = vand.u32 %v1055, 4294901760
    %1057 = vmatpush1.msra.mxu0 %v1056
    %1058 = vmatprep.subr.mxu0 0.0
    %v1059 = vand.u32 %v58, 4294901760
    %v1060 = vsub.f32 %v58, %v1059
    %v1061 = vand.u32 %v1060, 4294901760
    %v1062 = vsub.f32 %v1060, %v1061
    %v1063 = vand.u32 %v1062, 4294901760
    %1064 = vmatpush1.msra.mxu0 %v1063
    %1065 = vmatprep.subr.mxu0 0.0
    %v1066 = vand.u32 %v61, 4294901760
    %v1067 = vsub.f32 %v61, %v1066
    %v1068 = vand.u32 %v1067, 4294901760
    %v1069 = vsub.f32 %v1067, %v1068
    %v1070 = vand.u32 %v1069, 4294901760
    %1071 = vmatpush1.msra.mxu0 %v1070
    %1072 = vmatprep.subr.mxu0 0.0
    %v1073 = vand.u32 %v64, 4294901760
    %v1074 = vsub.f32 %v64, %v1073
    %v1075 = vand.u32 %v1074, 4294901760
    %v1076 = vsub.f32 %v1074, %v1075
    %v1077 = vand.u32 %v1076, 4294901760
    %1078 = vmatpush1.msra.mxu0 %v1077
    %1079 = vmatprep.subr.mxu0 0.0
    %v1080 = vand.u32 %v67, 4294901760
    %v1081 = vsub.f32 %v67, %v1080
    %v1082 = vand.u32 %v1081, 4294901760
    %v1083 = vsub.f32 %v1081, %v1082
    %v1084 = vand.u32 %v1083, 4294901760
    %1085 = vmatpush1.msra.mxu0 %v1084
    %1086 = vmatprep.subr.mxu0 0.0
    %v1087 = vand.u32 %v70, 4294901760
    %v1088 = vsub.f32 %v70, %v1087
    %v1089 = vand.u32 %v1088, 4294901760
    %v1090 = vsub.f32 %v1088, %v1089
    %v1091 = vand.u32 %v1090, 4294901760
    %1092 = vmatpush1.msra.mxu0 %v1091
    %1093 = vmatprep.subr.mxu0 0.0
    %v1094 = vand.u32 %v73, 4294901760
    %v1095 = vsub.f32 %v73, %v1094
    %v1096 = vand.u32 %v1095, 4294901760
    %v1097 = vsub.f32 %v1095, %v1096
    %v1098 = vand.u32 %v1097, 4294901760
    %1099 = vmatpush1.msra.mxu0 %v1098
    %1100 = vmatprep.subr.mxu0 0.0
    %v1101 = vand.u32 %v76, 4294901760
    %v1102 = vsub.f32 %v76, %v1101
    %v1103 = vand.u32 %v1102, 4294901760
    %v1104 = vsub.f32 %v1102, %v1103
    %v1105 = vand.u32 %v1104, 4294901760
    %1106 = vmatpush1.msra.mxu0 %v1105
    %1107 = vmatprep.subr.mxu0 0.0
    %v1108 = vand.u32 %v79, 4294901760
    %v1109 = vsub.f32 %v79, %v1108
    %v1110 = vand.u32 %v1109, 4294901760
    %v1111 = vsub.f32 %v1109, %v1110
    %v1112 = vand.u32 %v1111, 4294901760
    %1113 = vmatpush1.msra.mxu0 %v1112
    %1114 = vmatprep.subr.mxu0 0.0
    %v1115 = vand.u32 %v82, 4294901760
    %v1116 = vsub.f32 %v82, %v1115
    %v1117 = vand.u32 %v1116, 4294901760
    %v1118 = vsub.f32 %v1116, %v1117
    %v1119 = vand.u32 %v1118, 4294901760
    %1120 = vmatpush1.msra.mxu0 %v1119
    %1121 = vmatprep.subr.mxu0 0.0
    %v1122 = vand.u32 %v85, 4294901760
    %v1123 = vsub.f32 %v85, %v1122
    %v1124 = vand.u32 %v1123, 4294901760
    %v1125 = vsub.f32 %v1123, %v1124
    %v1126 = vand.u32 %v1125, 4294901760
    %1127 = vmatpush1.msra.mxu0 %v1126
    %1128 = vmatprep.subr.mxu0 0.0
    %v1129 = vand.u32 %v88, 4294901760
    %v1130 = vsub.f32 %v88, %v1129
    %v1131 = vand.u32 %v1130, 4294901760
    %v1132 = vsub.f32 %v1130, %v1131
    %v1133 = vand.u32 %v1132, 4294901760
    %1134 = vmatpush1.msra.mxu0 %v1133
    %1135 = vmatprep.subr.mxu0 0.0
    %v1136 = vand.u32 %v91, 4294901760
    %v1137 = vsub.f32 %v91, %v1136
    %v1138 = vand.u32 %v1137, 4294901760
    %v1139 = vsub.f32 %v1137, %v1138
    %v1140 = vand.u32 %v1139, 4294901760
    %1141 = vmatpush1.msra.mxu0 %v1140
    %1142 = vmatprep.subr.mxu0 0.0
    %v1143 = vand.u32 %v94, 4294901760
    %v1144 = vsub.f32 %v94, %v1143
    %v1145 = vand.u32 %v1144, 4294901760
    %v1146 = vsub.f32 %v1144, %v1145
    %v1147 = vand.u32 %v1146, 4294901760
    %1148 = vmatpush1.msra.mxu0 %v1147
    %1149 = vmatprep.subr.mxu0 0.0
    %v1150 = vand.u32 %v97, 4294901760
    %v1151 = vsub.f32 %v97, %v1150
    %v1152 = vand.u32 %v1151, 4294901760
    %v1153 = vsub.f32 %v1151, %v1152
    %v1154 = vand.u32 %v1153, 4294901760
    %1155 = vmatpush1.msra.mxu0 %v1154
    %1156 = vmatprep.subr.mxu0 0.0
    %1157 = vmatpush1.msra.mxu0 0.0
    %1158 = vmatprep.subr.mxu0 0.0
    %1159 = vmatpush1.msra.mxu0 0.0
    %1160 = vmatprep.subr.mxu0 0.0
    %1161 = vmatpush1.msra.mxu0 0.0
    %1162 = vmatprep.subr.mxu0 0.0
    %1163 = vmatpush1.msra.mxu0 0.0
    %1164 = vmatprep.subr.mxu0 0.0
    %1165 = vmatpush1.msra.mxu0 0.0
    %1166 = vmatprep.subr.mxu0 0.0
    %1167 = vmatpush1.msra.mxu0 0.0
    %1168 = vmatprep.subr.mxu0 0.0
    %1169 = vmatpush1.msra.mxu0 0.0
    %1170 = vmatprep.subr.mxu0 0.0
    %1171 = vmatpush1.msra.mxu0 0.0
    %1172 = vmatprep.subr.mxu0 0.0
    %1173 = vmatpush1.msra.mxu0 0.0
    %1174 = vmatprep.subr.mxu0 0.0
    %1175 = vmatpush1.msra.mxu0 0.0
    %1176 = vmatprep.subr.mxu0 0.0
    %1177 = vmatpush1.msra.mxu0 0.0
    %1178 = vmatprep.subr.mxu0 0.0
    %1179 = vmatpush1.msra.mxu0 0.0
    %1180 = vmatprep.subr.mxu0 0.0
    %1181 = vmatpush1.msra.mxu0 0.0
    %1182 = vmatprep.subr.mxu0 0.0
    %1183 = vmatpush1.msra.mxu0 0.0
    %1184 = vmatprep.subr.mxu0 0.0
    %1185 = vmatpush1.msra.mxu0 0.0
    %1186 = vmatprep.subr.mxu0 0.0
    %1187 = vmatpush1.msra.mxu0 0.0
    %1188 = vmatprep.mubr.f32.mxu0 0.0
    %v1189 = vand.u32 %v49, 4294901760
    %1190 = vmatmul.mubr.f32.gmra.mrb[0].mxu0 %v1189
    %v1191 = vpop.f32.mrb[0].mxu0
    %v1192 = vadd.f32 %v1041, %v1191
    %v1193 = vpop.f32.mrb[0].mxu0
    %1194 = vdwg.mxu0
    %1195 = vmatprep.subr.mxu0 0.0
    %v1196 = vand.u32 %v52, 4294901760
    %v1197 = vsub.f32 %v52, %v1196
    %1198 = vmatpush1.msra.mxu0 %v1197
    %1199 = vmatprep.subr.mxu0 0.0
    %v1200 = vand.u32 %v55, 4294901760
    %v1201 = vsub.f32 %v55, %v1200
    %1202 = vmatpush1.msra.mxu0 %v1201
    %1203 = vmatprep.subr.mxu0 0.0
    %v1204 = vand.u32 %v58, 4294901760
    %v1205 = vsub.f32 %v58, %v1204
    %1206 = vmatpush1.msra.mxu0 %v1205
    %1207 = vmatprep.subr.mxu0 0.0
    %v1208 = vand.u32 %v61, 4294901760
    %v1209 = vsub.f32 %v61, %v1208
    %1210 = vmatpush1.msra.mxu0 %v1209
    %1211 = vmatprep.subr.mxu0 0.0
    %v1212 = vand.u32 %v64, 4294901760
    %v1213 = vsub.f32 %v64, %v1212
    %1214 = vmatpush1.msra.mxu0 %v1213
    %1215 = vmatprep.subr.mxu0 0.0
    %v1216 = vand.u32 %v67, 4294901760
    %v1217 = vsub.f32 %v67, %v1216
    %1218 = vmatpush1.msra.mxu0 %v1217
    %1219 = vmatprep.subr.mxu0 0.0
    %v1220 = vand.u32 %v70, 4294901760
    %v1221 = vsub.f32 %v70, %v1220
    %1222 = vmatpush1.msra.mxu0 %v1221
    %1223 = vmatprep.subr.mxu0 0.0
    %v1224 = vand.u32 %v73, 4294901760
    %v1225 = vsub.f32 %v73, %v1224
    %1226 = vmatpush1.msra.mxu0 %v1225
    %1227 = vmatprep.subr.mxu0 0.0
    %v1228 = vand.u32 %v76, 4294901760
    %v1229 = vsub.f32 %v76, %v1228
    %1230 = vmatpush1.msra.mxu0 %v1229
    %1231 = vmatprep.subr.mxu0 0.0
    %v1232 = vand.u32 %v79, 4294901760
    %v1233 = vsub.f32 %v79, %v1232
    %1234 = vmatpush1.msra.mxu0 %v1233
    %1235 = vmatprep.subr.mxu0 0.0
    %v1236 = vand.u32 %v82, 4294901760
    %v1237 = vsub.f32 %v82, %v1236
    %1238 = vmatpush1.msra.mxu0 %v1237
    %1239 = vmatprep.subr.mxu0 0.0
    %v1240 = vand.u32 %v85, 4294901760
    %v1241 = vsub.f32 %v85, %v1240
    %1242 = vmatpush1.msra.mxu0 %v1241
    %1243 = vmatprep.subr.mxu0 0.0
    %v1244 = vand.u32 %v88, 4294901760
    %v1245 = vsub.f32 %v88, %v1244
    %1246 = vmatpush1.msra.mxu0 %v1245
    %1247 = vmatprep.subr.mxu0 0.0
    %v1248 = vand.u32 %v91, 4294901760
    %v1249 = vsub.f32 %v91, %v1248
    %1250 = vmatpush1.msra.mxu0 %v1249
    %1251 = vmatprep.subr.mxu0 0.0
    %v1252 = vand.u32 %v94, 4294901760
    %v1253 = vsub.f32 %v94, %v1252
    %1254 = vmatpush1.msra.mxu0 %v1253
    %1255 = vmatprep.subr.mxu0 0.0
    %v1256 = vand.u32 %v97, 4294901760
    %v1257 = vsub.f32 %v97, %v1256
    %1258 = vmatpush1.msra.mxu0 %v1257
    %1259 = vmatprep.subr.mxu0 0.0
    %1260 = vmatpush1.msra.mxu0 0.0
    %1261 = vmatprep.subr.mxu0 0.0
    %1262 = vmatpush1.msra.mxu0 0.0
    %1263 = vmatprep.subr.mxu0 0.0
    %1264 = vmatpush1.msra.mxu0 0.0
    %1265 = vmatprep.subr.mxu0 0.0
    %1266 = vmatpush1.msra.mxu0 0.0
    %1267 = vmatprep.subr.mxu0 0.0
    %1268 = vmatpush1.msra.mxu0 0.0
    %1269 = vmatprep.subr.mxu0 0.0
    %1270 = vmatpush1.msra.mxu0 0.0
    %1271 = vmatprep.subr.mxu0 0.0
    %1272 = vmatpush1.msra.mxu0 0.0
    %1273 = vmatprep.subr.mxu0 0.0
    %1274 = vmatpush1.msra.mxu0 0.0
    %1275 = vmatprep.subr.mxu0 0.0
    %1276 = vmatpush1.msra.mxu0 0.0
    %1277 = vmatprep.subr.mxu0 0.0
    %1278 = vmatpush1.msra.mxu0 0.0
    %1279 = vmatprep.subr.mxu0 0.0
    %1280 = vmatpush1.msra.mxu0 0.0
    %1281 = vmatprep.subr.mxu0 0.0
    %1282 = vmatpush1.msra.mxu0 0.0
    %1283 = vmatprep.subr.mxu0 0.0
    %1284 = vmatpush1.msra.mxu0 0.0
    %1285 = vmatprep.subr.mxu0 0.0
    %1286 = vmatpush1.msra.mxu0 0.0
    %1287 = vmatprep.subr.mxu0 0.0
    %1288 = vmatpush1.msra.mxu0 0.0
    %1289 = vmatprep.subr.mxu0 0.0
    %1290 = vmatpush1.msra.mxu0 0.0
    %1291 = vmatprep.mubr.f32.mxu0 0.0
    %v1292 = vand.u32 %v49, 4294901760
    %v1293 = vsub.f32 %v49, %v1292
    %1294 = vmatmul.mubr.f32.gmra.mrb[0].mxu0 %v1293
    %v1295 = vpop.f32.mrb[0].mxu0
    %v1296 = vadd.f32 %v1192, %v1295
    %v1297 = vpop.f32.mrb[0].mxu0
    %1298 = vdwg.mxu0
    %1299 = vmatprep.subr.mxu0 0.0
    %v1300 = vand.u32 %v52, 4294901760
    %1301 = vmatpush1.msra.mxu0 %v1300
    %1302 = vmatprep.subr.mxu0 0.0
    %v1303 = vand.u32 %v55, 4294901760
    %1304 = vmatpush1.msra.mxu0 %v1303
    %1305 = vmatprep.subr.mxu0 0.0
    %v1306 = vand.u32 %v58, 4294901760
    %1307 = vmatpush1.msra.mxu0 %v1306
    %1308 = vmatprep.subr.mxu0 0.0
    %v1309 = vand.u32 %v61, 4294901760
    %1310 = vmatpush1.msra.mxu0 %v1309
    %1311 = vmatprep.subr.mxu0 0.0
    %v1312 = vand.u32 %v64, 4294901760
    %1313 = vmatpush1.msra.mxu0 %v1312
    %1314 = vmatprep.subr.mxu0 0.0
    %v1315 = vand.u32 %v67, 4294901760
    %1316 = vmatpush1.msra.mxu0 %v1315
    %1317 = vmatprep.subr.mxu0 0.0
    %v1318 = vand.u32 %v70, 4294901760
    %1319 = vmatpush1.msra.mxu0 %v1318
    %1320 = vmatprep.subr.mxu0 0.0
    %v1321 = vand.u32 %v73, 4294901760
    %1322 = vmatpush1.msra.mxu0 %v1321
    %1323 = vmatprep.subr.mxu0 0.0
    %v1324 = vand.u32 %v76, 4294901760
    %1325 = vmatpush1.msra.mxu0 %v1324
    %1326 = vmatprep.subr.mxu0 0.0
    %v1327 = vand.u32 %v79, 4294901760
    %1328 = vmatpush1.msra.mxu0 %v1327
    %1329 = vmatprep.subr.mxu0 0.0
    %v1330 = vand.u32 %v82, 4294901760
    %1331 = vmatpush1.msra.mxu0 %v1330
    %1332 = vmatprep.subr.mxu0 0.0
    %v1333 = vand.u32 %v85, 4294901760
    %1334 = vmatpush1.msra.mxu0 %v1333
    %1335 = vmatprep.subr.mxu0 0.0
    %v1336 = vand.u32 %v88, 4294901760
    %1337 = vmatpush1.msra.mxu0 %v1336
    %1338 = vmatprep.subr.mxu0 0.0
    %v1339 = vand.u32 %v91, 4294901760
    %1340 = vmatpush1.msra.mxu0 %v1339
    %1341 = vmatprep.subr.mxu0 0.0
    %v1342 = vand.u32 %v94, 4294901760
    %1343 = vmatpush1.msra.mxu0 %v1342
    %1344 = vmatprep.subr.mxu0 0.0
    %v1345 = vand.u32 %v97, 4294901760
    %1346 = vmatpush1.msra.mxu0 %v1345
    %1347 = vmatprep.subr.mxu0 0.0
    %1348 = vmatpush1.msra.mxu0 0.0
    %1349 = vmatprep.subr.mxu0 0.0
    %1350 = vmatpush1.msra.mxu0 0.0
    %1351 = vmatprep.subr.mxu0 0.0
    %1352 = vmatpush1.msra.mxu0 0.0
    %1353 = vmatprep.subr.mxu0 0.0
    %1354 = vmatpush1.msra.mxu0 0.0
    %1355 = vmatprep.subr.mxu0 0.0
    %1356 = vmatpush1.msra.mxu0 0.0
    %1357 = vmatprep.subr.mxu0 0.0
    %1358 = vmatpush1.msra.mxu0 0.0
    %1359 = vmatprep.subr.mxu0 0.0
    %1360 = vmatpush1.msra.mxu0 0.0
    %1361 = vmatprep.subr.mxu0 0.0
    %1362 = vmatpush1.msra.mxu0 0.0
    %1363 = vmatprep.subr.mxu0 0.0
    %1364 = vmatpush1.msra.mxu0 0.0
    %1365 = vmatprep.subr.mxu0 0.0
    %1366 = vmatpush1.msra.mxu0 0.0
    %1367 = vmatprep.subr.mxu0 0.0
    %1368 = vmatpush1.msra.mxu0 0.0
    %1369 = vmatprep.subr.mxu0 0.0
    %1370 = vmatpush1.msra.mxu0 0.0
    %1371 = vmatprep.subr.mxu0 0.0
    %1372 = vmatpush1.msra.mxu0 0.0
    %1373 = vmatprep.subr.mxu0 0.0
    %1374 = vmatpush1.msra.mxu0 0.0
    %1375 = vmatprep.subr.mxu0 0.0
    %1376 = vmatpush1.msra.mxu0 0.0
    %1377 = vmatprep.subr.mxu0 0.0
    %1378 = vmatpush1.msra.mxu0 0.0
    %1379 = vmatprep.mubr.f32.mxu0 0.0
    %v1380 = vand.u32 %v49, 4294901760
    %v1381 = vsub.f32 %v49, %v1380
    %v1382 = vand.u32 %v1381, 4294901760
    %1383 = vmatmul.mubr.f32.gmra.mrb[0].mxu0 %v1382
    %v1384 = vpop.f32.mrb[0].mxu0
    %v1385 = vadd.f32 %v1296, %v1384
    %v1386 = vpop.f32.mrb[0].mxu0
    %1387 = vdwg.mxu0
    %1388 = vmatprep.subr.mxu0 0.0
    %v1389 = vand.u32 %v52, 4294901760
    %v1390 = vsub.f32 %v52, %v1389
    %v1391 = vand.u32 %v1390, 4294901760
    %1392 = vmatpush1.msra.mxu0 %v1391
    %1393 = vmatprep.subr.mxu0 0.0
    %v1394 = vand.u32 %v55, 4294901760
    %v1395 = vsub.f32 %v55, %v1394
    %v1396 = vand.u32 %v1395, 4294901760
    %1397 = vmatpush1.msra.mxu0 %v1396
    %1398 = vmatprep.subr.mxu0 0.0
    %v1399 = vand.u32 %v58, 4294901760
    %v1400 = vsub.f32 %v58, %v1399
    %v1401 = vand.u32 %v1400, 4294901760
    %1402 = vmatpush1.msra.mxu0 %v1401
    %1403 = vmatprep.subr.mxu0 0.0
    %v1404 = vand.u32 %v61, 4294901760
    %v1405 = vsub.f32 %v61, %v1404
    %v1406 = vand.u32 %v1405, 4294901760
    %1407 = vmatpush1.msra.mxu0 %v1406
    %1408 = vmatprep.subr.mxu0 0.0
    %v1409 = vand.u32 %v64, 4294901760
    %v1410 = vsub.f32 %v64, %v1409
    %v1411 = vand.u32 %v1410, 4294901760
    %1412 = vmatpush1.msra.mxu0 %v1411
    %1413 = vmatprep.subr.mxu0 0.0
    %v1414 = vand.u32 %v67, 4294901760
    %v1415 = vsub.f32 %v67, %v1414
    %v1416 = vand.u32 %v1415, 4294901760
    %1417 = vmatpush1.msra.mxu0 %v1416
    %1418 = vmatprep.subr.mxu0 0.0
    %v1419 = vand.u32 %v70, 4294901760
    %v1420 = vsub.f32 %v70, %v1419
    %v1421 = vand.u32 %v1420, 4294901760
    %1422 = vmatpush1.msra.mxu0 %v1421
    %1423 = vmatprep.subr.mxu0 0.0
    %v1424 = vand.u32 %v73, 4294901760
    %v1425 = vsub.f32 %v73, %v1424
    %v1426 = vand.u32 %v1425, 4294901760
    %1427 = vmatpush1.msra.mxu0 %v1426
    %1428 = vmatprep.subr.mxu0 0.0
    %v1429 = vand.u32 %v76, 4294901760
    %v1430 = vsub.f32 %v76, %v1429
    %v1431 = vand.u32 %v1430, 4294901760
    %1432 = vmatpush1.msra.mxu0 %v1431
    %1433 = vmatprep.subr.mxu0 0.0
    %v1434 = vand.u32 %v79, 4294901760
    %v1435 = vsub.f32 %v79, %v1434
    %v1436 = vand.u32 %v1435, 4294901760
    %1437 = vmatpush1.msra.mxu0 %v1436
    %1438 = vmatprep.subr.mxu0 0.0
    %v1439 = vand.u32 %v82, 4294901760
    %v1440 = vsub.f32 %v82, %v1439
    %v1441 = vand.u32 %v1440, 4294901760
    %1442 = vmatpush1.msra.mxu0 %v1441
    %1443 = vmatprep.subr.mxu0 0.0
    %v1444 = vand.u32 %v85, 4294901760
    %v1445 = vsub.f32 %v85, %v1444
    %v1446 = vand.u32 %v1445, 4294901760
    %1447 = vmatpush1.msra.mxu0 %v1446
    %1448 = vmatprep.subr.mxu0 0.0
    %v1449 = vand.u32 %v88, 4294901760
    %v1450 = vsub.f32 %v88, %v1449
    %v1451 = vand.u32 %v1450, 4294901760
    %1452 = vmatpush1.msra.mxu0 %v1451
    %1453 = vmatprep.subr.mxu0 0.0
    %v1454 = vand.u32 %v91, 4294901760
    %v1455 = vsub.f32 %v91, %v1454
    %v1456 = vand.u32 %v1455, 4294901760
    %1457 = vmatpush1.msra.mxu0 %v1456
    %1458 = vmatprep.subr.mxu0 0.0
    %v1459 = vand.u32 %v94, 4294901760
    %v1460 = vsub.f32 %v94, %v1459
    %v1461 = vand.u32 %v1460, 4294901760
    %1462 = vmatpush1.msra.mxu0 %v1461
    %1463 = vmatprep.subr.mxu0 0.0
    %v1464 = vand.u32 %v97, 4294901760
    %v1465 = vsub.f32 %v97, %v1464
    %v1466 = vand.u32 %v1465, 4294901760
    %1467 = vmatpush1.msra.mxu0 %v1466
    %1468 = vmatprep.subr.mxu0 0.0
    %1469 = vmatpush1.msra.mxu0 0.0
    %1470 = vmatprep.subr.mxu0 0.0
    %1471 = vmatpush1.msra.mxu0 0.0
    %1472 = vmatprep.subr.mxu0 0.0
    %1473 = vmatpush1.msra.mxu0 0.0
    %1474 = vmatprep.subr.mxu0 0.0
    %1475 = vmatpush1.msra.mxu0 0.0
    %1476 = vmatprep.subr.mxu0 0.0
    %1477 = vmatpush1.msra.mxu0 0.0
    %1478 = vmatprep.subr.mxu0 0.0
    %1479 = vmatpush1.msra.mxu0 0.0
    %1480 = vmatprep.subr.mxu0 0.0
    %1481 = vmatpush1.msra.mxu0 0.0
    %1482 = vmatprep.subr.mxu0 0.0
    %1483 = vmatpush1.msra.mxu0 0.0
    %1484 = vmatprep.subr.mxu0 0.0
    %1485 = vmatpush1.msra.mxu0 0.0
    %1486 = vmatprep.subr.mxu0 0.0
    %1487 = vmatpush1.msra.mxu0 0.0
    %1488 = vmatprep.subr.mxu0 0.0
    %1489 = vmatpush1.msra.mxu0 0.0
    %1490 = vmatprep.subr.mxu0 0.0
    %1491 = vmatpush1.msra.mxu0 0.0
    %1492 = vmatprep.subr.mxu0 0.0
    %1493 = vmatpush1.msra.mxu0 0.0
    %1494 = vmatprep.subr.mxu0 0.0
    %1495 = vmatpush1.msra.mxu0 0.0
    %1496 = vmatprep.subr.mxu0 0.0
    %1497 = vmatpush1.msra.mxu0 0.0
    %1498 = vmatprep.subr.mxu0 0.0
    %1499 = vmatpush1.msra.mxu0 0.0
    %1500 = vmatprep.mubr.f32.mxu0 0.0
    %v1501 = vand.u32 %v49, 4294901760
    %1502 = vmatmul.mubr.f32.gmra.mrb[0].mxu0 %v1501
    %v1503 = vpop.f32.mrb[0].mxu0
    %v1504 = vadd.f32 %v1385, %v1503
    %v1505 = vpop.f32.mrb[0].mxu0
    %1506 = vdwg.mxu0
    %1507 = vmatprep.subr.mxu0 0.0
    %v1508 = vand.u32 %v52, 4294901760
    %1509 = vmatpush1.msra.mxu0 %v1508
    %1510 = vmatprep.subr.mxu0 0.0
    %v1511 = vand.u32 %v55, 4294901760
    %1512 = vmatpush1.msra.mxu0 %v1511
    %1513 = vmatprep.subr.mxu0 0.0
    %v1514 = vand.u32 %v58, 4294901760
    %1515 = vmatpush1.msra.mxu0 %v1514
    %1516 = vmatprep.subr.mxu0 0.0
    %v1517 = vand.u32 %v61, 4294901760
    %1518 = vmatpush1.msra.mxu0 %v1517
    %1519 = vmatprep.subr.mxu0 0.0
    %v1520 = vand.u32 %v64, 4294901760
    %1521 = vmatpush1.msra.mxu0 %v1520
    %1522 = vmatprep.subr.mxu0 0.0
    %v1523 = vand.u32 %v67, 4294901760
    %1524 = vmatpush1.msra.mxu0 %v1523
    %1525 = vmatprep.subr.mxu0 0.0
    %v1526 = vand.u32 %v70, 4294901760
    %1527 = vmatpush1.msra.mxu0 %v1526
    %1528 = vmatprep.subr.mxu0 0.0
    %v1529 = vand.u32 %v73, 4294901760
    %1530 = vmatpush1.msra.mxu0 %v1529
    %1531 = vmatprep.subr.mxu0 0.0
    %v1532 = vand.u32 %v76, 4294901760
    %1533 = vmatpush1.msra.mxu0 %v1532
    %1534 = vmatprep.subr.mxu0 0.0
    %v1535 = vand.u32 %v79, 4294901760
    %1536 = vmatpush1.msra.mxu0 %v1535
    %1537 = vmatprep.subr.mxu0 0.0
    %v1538 = vand.u32 %v82, 4294901760
    %1539 = vmatpush1.msra.mxu0 %v1538
    %1540 = vmatprep.subr.mxu0 0.0
    %v1541 = vand.u32 %v85, 4294901760
    %1542 = vmatpush1.msra.mxu0 %v1541
    %1543 = vmatprep.subr.mxu0 0.0
    %v1544 = vand.u32 %v88, 4294901760
    %1545 = vmatpush1.msra.mxu0 %v1544
    %1546 = vmatprep.subr.mxu0 0.0
    %v1547 = vand.u32 %v91, 4294901760
    %1548 = vmatpush1.msra.mxu0 %v1547
    %1549 = vmatprep.subr.mxu0 0.0
    %v1550 = vand.u32 %v94, 4294901760
    %1551 = vmatpush1.msra.mxu0 %v1550
    %1552 = vmatprep.subr.mxu0 0.0
    %v1553 = vand.u32 %v97, 4294901760
    %1554 = vmatpush1.msra.mxu0 %v1553
    %1555 = vmatprep.subr.mxu0 0.0
    %1556 = vmatpush1.msra.mxu0 0.0
    %1557 = vmatprep.subr.mxu0 0.0
    %1558 = vmatpush1.msra.mxu0 0.0
    %1559 = vmatprep.subr.mxu0 0.0
    %1560 = vmatpush1.msra.mxu0 0.0
    %1561 = vmatprep.subr.mxu0 0.0
    %1562 = vmatpush1.msra.mxu0 0.0
    %1563 = vmatprep.subr.mxu0 0.0
    %1564 = vmatpush1.msra.mxu0 0.0
    %1565 = vmatprep.subr.mxu0 0.0
    %1566 = vmatpush1.msra.mxu0 0.0
    %1567 = vmatprep.subr.mxu0 0.0
    %1568 = vmatpush1.msra.mxu0 0.0
    %1569 = vmatprep.subr.mxu0 0.0
    %1570 = vmatpush1.msra.mxu0 0.0
    %1571 = vmatprep.subr.mxu0 0.0
    %1572 = vmatpush1.msra.mxu0 0.0
    %1573 = vmatprep.subr.mxu0 0.0
    %1574 = vmatpush1.msra.mxu0 0.0
    %1575 = vmatprep.subr.mxu0 0.0
    %1576 = vmatpush1.msra.mxu0 0.0
    %1577 = vmatprep.subr.mxu0 0.0
    %1578 = vmatpush1.msra.mxu0 0.0
    %1579 = vmatprep.subr.mxu0 0.0
    %1580 = vmatpush1.msra.mxu0 0.0
    %1581 = vmatprep.subr.mxu0 0.0
    %1582 = vmatpush1.msra.mxu0 0.0
    %1583 = vmatprep.subr.mxu0 0.0
    %1584 = vmatpush1.msra.mxu0 0.0
    %1585 = vmatprep.subr.mxu0 0.0
    %1586 = vmatpush1.msra.mxu0 0.0
    %1587 = vmatprep.mubr.f32.mxu0 0.0
    %v1588 = vand.u32 %v49, 4294901760
    %1589 = vmatmul.mubr.f32.gmra.mrb[0].mxu0 %v1588
    %v1590 = vpop.f32.mrb[0].mxu0
    %v1591 = vadd.f32 %v1504, %v1590
    %v1592 = vpop.f32.mrb[0].mxu0
    %1593 = vdwg.mxu0
    %v1594 = vld [vmem:[%s4] sm:$0xff]
    %v1595 = vld [vmem:[%s4 + $0x8] sm:$0xff]
    %v1596 = vld [vmem:[%s4 + $0x10] sm:$0xff]
    %v1597 = vmul.f32 %v1594, %v949
    %v1598 = vmul.f32 %v1595, %v951
    %v1599 = vmul.f32 %v1596, %v1591
    %v1600 = vmul.f32 %v1597, 0.5
    %v1601 = vmul.f32 %v1598, 0.5
    %v1602 = vmul.f32 %v1599, 0.5
    %v1603 = vfloor.f32 %v1600
    %v1604 = vfloor.f32 %v1601
    %v1605 = vfloor.f32 %v1602
    %v1606 = vsub.f32 %v1600, %v1603
    %v1607 = vsub.f32 %v1601, %v1604
    %v1608 = vsub.f32 %v1602, %v1605
    %v1609 = vmul.f32 %v1606, 2.0
    %v1610 = vmul.f32 %v1607, 2.0
    %v1611 = vmul.f32 %v1608, 2.0
    %v1612 = vsub.f32 %v1609, 1.0
    %v1613 = vsub.f32 %v1610, 1.0
    %v1614 = vsub.f32 %v1611, 1.0
    %v1615 = vand.u32 2147483647, %v1612
    %v1616 = vand.u32 2147483647, %v1613
    %v1617 = vand.u32 2147483647, %v1614
    %v1618 = vsub.f32 1.0, %v1615
    %v1619 = vsub.f32 1.0, %v1616
    %v1620 = vsub.f32 1.0, %v1617
    %1621 = vst [vmem:[%s5] sm:$0xff] %v1618
    %1622 = vst [vmem:[%s5 + $0x8] sm:$0xff] %v1619
    %1623 = vst [vmem:[%s5 + $0x10] sm:$0xff] %v1620
    // Predicated region
    $region26: #{_vignetting_impl.1} parent=1 // pred_check
      _
    $region27: #{_vignetting_impl.1} parent=1 // pred_check_branch
      %1625 = sbr.rel (0) target = $region29
    $region28: #{_vignetting_impl.1} parent=1 // pred_region
      _
    $region29: #{_vignetting_impl.1} parent=1 // pred_fallthru
      _
    // Predicated region
    $region30: #{_vignetting_impl.1} parent=1 // pred_check
      _
    $region31: #{_vignetting_impl.1} parent=1 // pred_check_branch
      %1627 = sbr.rel (0) target = $region33
    $region32: #{_vignetting_impl.1} parent=1 // pred_region
      _
    $region33: #{_vignetting_impl.1} parent=1 // pred_fallthru
      _
    %1628 = vsyncpa [#allocation3], 1

</llo_original>
